<compile_context>
chip_gen: v6e
topology: v6e:2x2x1
jax: 0.10.0
libtpu: 0.0.40
codegen_flags: <defaults>
</compile_context>

<pallas_src>
import math
from functools import partial

import jax
import jax.numpy as jnp
from jax import lax
from jax.experimental import pallas as pl
from jax.experimental.pallas import tpu as pltpu

LN_EPS = 1e-12
NEG_BIG = -1e9
ROW_TILE = 256          # MXU-native M tile on v6e/v7x; fine (2x128) on v5e


def _row_tile(M):
    return M if M <= ROW_TILE else ROW_TILE


# ----------------------------- Pallas kernels -----------------------------

def _dense_kernel(x_ref, w_ref, b_ref, o_ref, *, activation):
    x = x_ref[...].astype(jnp.bfloat16)
    w = w_ref[...].astype(jnp.bfloat16)
    h = jnp.dot(x, w, preferred_element_type=jnp.float32)
    h = h + b_ref[...].astype(jnp.float32)
    if activation == "gelu":
        # exact (erf-based) GELU, as used by HF BERT/MiniLM; kept in f32
        h = 0.5 * h * (1.0 + lax.erf(h * (1.0 / math.sqrt(2.0))))
    o_ref[...] = h.astype(o_ref.dtype)


def dense(x, w, b, activation=None, out_dtype=None):
    M, K = x.shape
    N = w.shape[1]
    out_dtype = out_dtype or x.dtype
    tm = _row_tile(M)
    ce = pl.CostEstimate(
        flops=2 * M * K * N,
        transcendentals=(M * N if activation == "gelu" else 0),
        bytes_accessed=M * K * x.dtype.itemsize + K * N * w.dtype.itemsize
        + M * N * jnp.dtype(out_dtype).itemsize)
    return pl.pallas_call(
        partial(_dense_kernel, activation=activation),
        out_shape=jax.ShapeDtypeStruct((M, N), out_dtype),
        grid=(pl.cdiv(M, tm),),
        in_specs=[pl.BlockSpec((tm, K), lambda i: (i, 0)),
                  pl.BlockSpec((K, N), lambda i: (0, 0)),   # weight resident
                  pl.BlockSpec((1, N), lambda i: (0, 0))],
        out_specs=pl.BlockSpec((tm, N), lambda i: (i, 0)),
        compiler_params=pltpu.CompilerParams(dimension_semantics=("parallel",)),
        cost_estimate=ce,
    )(x, w, b)


def _dense_add_ln_kernel(x_ref, w_ref, b_ref, r_ref, g_ref, bb_ref, o_ref):
    # out = LayerNorm(x @ W + b + residual) -- fused epilogue
    x = x_ref[...].astype(jnp.bfloat16)
    w = w_ref[...].astype(jnp.bfloat16)
    h = jnp.dot(x, w, preferred_element_type=jnp.float32)
    h = h + b_ref[...].astype(jnp.float32) + r_ref[...].astype(jnp.float32)
    mu = jnp.mean(h, axis=-1, keepdims=True)
    xc = h - mu
    var = jnp.mean(xc * xc, axis=-1, keepdims=True)
    y = xc * lax.rsqrt(var + LN_EPS)
    o_ref[...] = (y * g_ref[...].astype(jnp.float32)
                  + bb_ref[...].astype(jnp.float32)).astype(o_ref.dtype)


def dense_add_layernorm(x, w, b, res, gamma, beta, out_dtype=None):
    M, K = x.shape
    N = w.shape[1]
    out_dtype = out_dtype or x.dtype
    tm = _row_tile(M)
    ce = pl.CostEstimate(
        flops=2 * M * K * N + 8 * M * N,
        transcendentals=M,
        bytes_accessed=M * K * x.dtype.itemsize + K * N * w.dtype.itemsize
        + M * N * (res.dtype.itemsize + jnp.dtype(out_dtype).itemsize))
    return pl.pallas_call(
        _dense_add_ln_kernel,
        out_shape=jax.ShapeDtypeStruct((M, N), out_dtype),
        grid=(pl.cdiv(M, tm),),
        in_specs=[pl.BlockSpec((tm, K), lambda i: (i, 0)),
                  pl.BlockSpec((K, N), lambda i: (0, 0)),
                  pl.BlockSpec((1, N), lambda i: (0, 0)),
                  pl.BlockSpec((tm, N), lambda i: (i, 0)),
                  pl.BlockSpec((1, N), lambda i: (0, 0)),
                  pl.BlockSpec((1, N), lambda i: (0, 0))],
        out_specs=pl.BlockSpec((tm, N), lambda i: (i, 0)),
        compiler_params=pltpu.CompilerParams(dimension_semantics=("parallel",)),
        cost_estimate=ce,
    )(x, w, b, res, gamma, beta)


def _ln_kernel(x_ref, g_ref, b_ref, o_ref):
    x = x_ref[...].astype(jnp.float32)
    mu = jnp.mean(x, axis=-1, keepdims=True)
    xc = x - mu
    var = jnp.mean(xc * xc, axis=-1, keepdims=True)
    y = xc * lax.rsqrt(var + LN_EPS)
    o_ref[...] = (y * g_ref[...].astype(jnp.float32)
                  + b_ref[...].astype(jnp.float32)).astype(o_ref.dtype)


def layernorm(x, gamma, beta, out_dtype=None):
    M, H = x.shape
    out_dtype = out_dtype or x.dtype
    tm = _row_tile(M)
    return pl.pallas_call(
        _ln_kernel,
        out_shape=jax.ShapeDtypeStruct((M, H), out_dtype),
        grid=(pl.cdiv(M, tm),),
        in_specs=[pl.BlockSpec((tm, H), lambda i: (i, 0)),
                  pl.BlockSpec((1, H), lambda i: (0, 0)),
                  pl.BlockSpec((1, H), lambda i: (0, 0))],
        out_specs=pl.BlockSpec((tm, H), lambda i: (i, 0)),
        compiler_params=pltpu.CompilerParams(dimension_semantics=("parallel",)),
    )(x, gamma, beta)


def _attn_kernel(qkv_ref, m_ref, o_ref, *, nH, dh, scale):
    # qkv_ref block: (1, S, 3H) fused projections; o_ref block: (1, S, H).
    H = nH * dh
    qkv = qkv_ref[0]                                   # (S, 3H) bf16
    mask = m_ref[0].astype(jnp.float32)                # (1, S)
    neg = (1.0 - mask) * NEG_BIG                       # additive key mask
    ctx_heads = []
    for h in range(nH):                                # static unroll, nH small
        q_h = qkv[:, h * dh:(h + 1) * dh].astype(jnp.bfloat16)          # (S, dh)
        k_h = qkv[:, H + h * dh:H + (h + 1) * dh].astype(jnp.bfloat16)
        v_h = qkv[:, 2 * H + h * dh:2 * H + (h + 1) * dh].astype(jnp.bfloat16)
        # Q @ K^T without an explicit transpose (contract on last dims)
        s = lax.dot_general(q_h, k_h, (((1,), (1,)), ((), ())),
                            preferred_element_type=jnp.float32) * scale  # (S, S)
        s = s + neg                                   # broadcast over queries
        mx = jnp.max(s, axis=-1, keepdims=True)
        p = jnp.exp(s - mx)
        p = p / jnp.sum(p, axis=-1, keepdims=True)    # f32 softmax
        ctx_h = jnp.dot(p.astype(jnp.bfloat16), v_h,
                        preferred_element_type=jnp.float32)              # (S, dh)
        ctx_heads.append(ctx_h)
    o_ref[0] = jnp.concatenate(ctx_heads, axis=-1).astype(o_ref.dtype)   # (S, H)


# TODO(synk): for long production sequences, switch to a flash-style
# query-tiled attention (online softmax, K/V streamed) to bound VMEM by tile
# size instead of S^2.
def attention(qkv, mask3, *, nH, dh, scale):
    B, S, H3 = qkv.shape
    H = nH * dh
    ce = pl.CostEstimate(
        flops=4 * B * nH * S * S * dh,
        transcendentals=B * nH * S * S,
        bytes_accessed=B * S * (H3 + H) * qkv.dtype.itemsize + B * S * 4)
    return pl.pallas_call(
        partial(_attn_kernel, nH=nH, dh=dh, scale=scale),
        out_shape=jax.ShapeDtypeStruct((B, S, H), qkv.dtype),
        grid=(B,),
        in_specs=[pl.BlockSpec((1, S, H3), lambda b: (b, 0, 0)),
                  pl.BlockSpec((1, 1, S), lambda b: (b, 0, 0))],
        out_specs=pl.BlockSpec((1, S, H), lambda b: (b, 0, 0)),
        compiler_params=pltpu.CompilerParams(dimension_semantics=("parallel",)),
        cost_estimate=ce,
    )(qkv, mask3)


def _mean_pool_kernel(x_ref, m_ref, o_ref):
    x = x_ref[0].astype(jnp.float32)                   # (S, H)
    m = m_ref[0].astype(jnp.float32)                   # (1, S)
    summed = jnp.dot(m, x, preferred_element_type=jnp.float32)   # (1, H)
    denom = jnp.maximum(jnp.sum(m, axis=-1, keepdims=True), 1e-9)  # clamp(min=1e-9)
    o_ref[0] = (summed / denom).astype(o_ref.dtype)


def mean_pool(x, mask3):
    B, S, H = x.shape
    out = pl.pallas_call(
        _mean_pool_kernel,
        out_shape=jax.ShapeDtypeStruct((B, 1, H), jnp.float32),
        grid=(B,),
        in_specs=[pl.BlockSpec((1, S, H), lambda b: (b, 0, 0)),
                  pl.BlockSpec((1, 1, S), lambda b: (b, 0, 0))],
        out_specs=pl.BlockSpec((1, 1, H), lambda b: (b, 0, 0)),
        compiler_params=pltpu.CompilerParams(dimension_semantics=("parallel",)),
    )(x, mask3)
    return out.reshape(B, H)


# ----------------------------- model glue ---------------------------------

def init_params(key, *, vocab, max_pos, n_types, H, nH, I, L):
    def nrm(k, shape, s=0.02):
        return (s * jax.random.normal(k, shape)).astype(jnp.float32)

    keys = iter(jax.random.split(key, 3 + L * 4))
    p = {
        "word_emb": nrm(next(keys), (vocab, H)),
        "pos_emb": nrm(next(keys), (max_pos, H)),
        "type_emb": nrm(next(keys), (n_types, H)),
        "emb_ln_g": jnp.ones((1, H), jnp.float32),
        "emb_ln_b": jnp.zeros((1, H), jnp.float32),
        "layers": [],
    }
    for _ in range(L):
        lp = {
            # fused Q|K|V projection, stored bf16 for MXU / halved HBM bytes
            "Wqkv": nrm(next(keys), (H, 3 * H)).astype(jnp.bfloat16),
            "bqkv": jnp.zeros((1, 3 * H), jnp.float32),
            "Wo": nrm(next(keys), (H, H)).astype(jnp.bfloat16),
            "bo": jnp.zeros((1, H), jnp.float32),
            "ln1_g": jnp.ones((1, H), jnp.float32),
            "ln1_b": jnp.zeros((1, H), jnp.float32),
            "Wi": nrm(next(keys), (H, I)).astype(jnp.bfloat16),
            "bi": jnp.zeros((1, I), jnp.float32),
            "Wf": nrm(next(keys), (I, H)).astype(jnp.bfloat16),
            "bf": jnp.zeros((1, H), jnp.float32),
            "ln2_g": jnp.ones((1, H), jnp.float32),
            "ln2_b": jnp.zeros((1, H), jnp.float32),
        }
        p["layers"].append(lp)
    return p


def sbert_forward(params, input_ids, attention_mask, token_type_ids, *, nH):
    B, S = input_ids.shape
    H = params["word_emb"].shape[1]
    dh = H // nH
    scale = 1.0 / math.sqrt(dh)
    act_dtype = jnp.bfloat16

    # ---- embeddings (gathers are XLA glue; residual-free LN in Pallas) ----
    emb = (params["word_emb"][input_ids]
           + params["pos_emb"][jnp.arange(S)][None, :, :]
           + params["type_emb"][token_type_ids]).astype(jnp.float32)
    h = layernorm(emb.reshape(B * S, H),
                  params["emb_ln_g"], params["emb_ln_b"],
                  out_dtype=act_dtype)                       # (B*S, H) bf16

    mask3 = attention_mask.astype(jnp.float32)[:, None, :]   # (B, 1, S)

    for lp in params["layers"]:
        # ---- self-attention: fused QKV matmul, heads handled in-kernel ----
        qkv = dense(h, lp["Wqkv"], lp["bqkv"], out_dtype=act_dtype)     # (B*S, 3H)
        ctx = attention(qkv.reshape(B, S, 3 * H), mask3,
                        nH=nH, dh=dh, scale=scale)                      # (B, S, H)
        # Wo projection + residual + LayerNorm fused in one kernel
        h1 = dense_add_layernorm(ctx.reshape(B * S, H), lp["Wo"], lp["bo"],
                                 h, lp["ln1_g"], lp["ln1_b"],
                                 out_dtype=act_dtype)

        # ---- feed-forward: GELU dense, then Wf + residual + LN fused ----
        ff = dense(h1, lp["Wi"], lp["bi"], activation="gelu",
                   out_dtype=act_dtype)
        h = dense_add_layernorm(ff, lp["Wf"], lp["bf"],
                                h1, lp["ln2_g"], lp["ln2_b"],
                                out_dtype=act_dtype)

    # ---- masked mean pooling (SBert.mean_pooling), f32 output ----
    return mean_pool(h.reshape(B, S, H), mask3)


# TODO(synk): the HF tokenizer (string -> ids) and pretrained checkpoint load
# have no Pallas equivalent; inputs are integer token ids + attention mask.

if __name__ == "__main__":
    B, S = 2, 8
    H, nH, I, L = 32, 4, 64, 2
    VOCAB, MAX_POS, N_TYPES = 100, 16, 2

    key = jax.random.PRNGKey(0)
    k_param, k_ids = jax.random.split(key)

    params = init_params(k_param, vocab=VOCAB, max_pos=MAX_POS, n_types=N_TYPES,
                         H=H, nH=nH, I=I, L=L)

    input_ids = jax.random.randint(k_ids, (B, S), 0, VOCAB, dtype=jnp.int32)
    attention_mask = jnp.array([[1, 1, 1, 1, 1, 1, 1, 1],
                                [1, 1, 1, 1, 1, 0, 0, 0]], dtype=jnp.float32)
    token_type_ids = jnp.zeros((B, S), dtype=jnp.int32)

    fwd = jax.jit(partial(sbert_forward, nH=nH))
    out = fwd(params, input_ids, attention_mask, token_type_ids)
    out = jax.block_until_ready(out)

    assert out.shape == (B, H)
    assert out.dtype == jnp.float32
    assert bool(jnp.all(jnp.isfinite(out)))
    print("KERNEL_OK")
</pallas_src>

<mosaic_0001>
module attributes {stable_mosaic.version = 11 : i64} {
  func.func @_ln_kernel(%arg0: i32, %arg1: memref<16x32xf32, #tpu.memory_space<vmem>>, %arg2: memref<1x32xf32, #tpu.memory_space<vmem>>, %arg3: memref<1x32xf32, #tpu.memory_space<vmem>>, %arg4: memref<16x32xbf16, #tpu.memory_space<vmem>>) attributes {dimension_semantics = [#tpu.dimension_semantics<parallel>], iteration_bounds = array<i64: 1>, scalar_prefetch = 0 : i64, scratch_operands = 0 : i64, tpu.core_type = #tpu.core_type<tc>, window_params = [{transform_indices = @transform_0, window_bounds = array<i64: 16, 32>}, {pipeline_mode = #tpu.pipeline_mode<synchronous>, transform_indices = @transform_1, window_bounds = array<i64: 1, 32>}, {pipeline_mode = #tpu.pipeline_mode<synchronous>, transform_indices = @transform_2, window_bounds = array<i64: 1, 32>}, {transform_indices = @transform_3, window_bounds = array<i64: 16, 32>}]} {
    %c0 = arith.constant 0 : index
    %c0_0 = arith.constant 0 : index
    %0 = vector.load %arg1[%c0, %c0_0] : memref<16x32xf32, #tpu.memory_space<vmem>>, vector<16x32xf32>
    %cst = arith.constant dense<0.000000e+00> : vector<16xf32>
    %1 = vector.multi_reduction <add>, %0, %cst [1] : vector<16x32xf32> to vector<16xf32>
    %2 = vector.shape_cast %1 : vector<16xf32> to vector<16x1xf32>
    %cst_1 = arith.constant 3.200000e+01 : f32
    %3 = vector.broadcast %cst_1 : f32 to vector<16x1xf32>
    %4 = arith.divf %2, %3 : vector<16x1xf32>
    %5 = vector.broadcast %4 : vector<16x1xf32> to vector<16x32xf32>
    %6 = arith.subf %0, %5 : vector<16x32xf32>
    %7 = arith.mulf %6, %6 : vector<16x32xf32>
    %cst_2 = arith.constant dense<0.000000e+00> : vector<16xf32>
    %8 = vector.multi_reduction <add>, %7, %cst_2 [1] : vector<16x32xf32> to vector<16xf32>
    %9 = vector.shape_cast %8 : vector<16xf32> to vector<16x1xf32>
    %cst_3 = arith.constant 3.200000e+01 : f32
    %10 = vector.broadcast %cst_3 : f32 to vector<16x1xf32>
    %11 = arith.divf %9, %10 : vector<16x1xf32>
    %cst_4 = arith.constant 9.99999996E-13 : f32
    %12 = vector.broadcast %cst_4 : f32 to vector<16x1xf32>
    %13 = arith.addf %11, %12 : vector<16x1xf32>
    %14 = math.rsqrt %13 : vector<16x1xf32>
    %15 = vector.broadcast %14 : vector<16x1xf32> to vector<16x32xf32>
    %16 = arith.mulf %6, %15 : vector<16x32xf32>
    %c0_5 = arith.constant 0 : index
    %c0_6 = arith.constant 0 : index
    %17 = vector.load %arg2[%c0_5, %c0_6] : memref<1x32xf32, #tpu.memory_space<vmem>>, vector<1x32xf32>
    %18 = vector.broadcast %17 : vector<1x32xf32> to vector<16x32xf32>
    %19 = arith.mulf %16, %18 : vector<16x32xf32>
    %c0_7 = arith.constant 0 : index
    %c0_8 = arith.constant 0 : index
    %20 = vector.load %arg3[%c0_7, %c0_8] : memref<1x32xf32, #tpu.memory_space<vmem>>, vector<1x32xf32>
    %21 = vector.broadcast %20 : vector<1x32xf32> to vector<16x32xf32>
    %22 = arith.addf %19, %21 : vector<16x32xf32>
    %23 = arith.truncf %22 : vector<16x32xf32> to vector<16x32xbf16>
    %c0_9 = arith.constant 0 : index
    %c0_10 = arith.constant 0 : index
    %24 = vector.load %arg4[%c0_9, %c0_10] : memref<16x32xbf16, #tpu.memory_space<vmem>>, vector<16x32xbf16>
    tpu.vector_store %arg4[%c0_9, %c0_10], %23 {strides = array<i32>} : memref<16x32xbf16, #tpu.memory_space<vmem>>, vector<16x32xbf16>,
    return
  }
  func.func @transform_0(%arg0: i32) -> (i32, i32) {
    %c0_i32 = arith.constant 0 : i32
    %c0_i32_0 = arith.constant 0 : i32
    return %arg0, %c0_i32 : i32, i32
  }
  func.func @transform_1(%arg0: i32) -> (i32, i32) {
    %c0_i32 = arith.constant 0 : i32
    %c0_i32_0 = arith.constant 0 : i32
    %c0_i32_1 = arith.constant 0 : i32
    return %c0_i32, %c0_i32_0 : i32, i32
  }
  func.func @transform_2(%arg0: i32) -> (i32, i32) {
    %c0_i32 = arith.constant 0 : i32
    %c0_i32_0 = arith.constant 0 : i32
    %c0_i32_1 = arith.constant 0 : i32
    return %c0_i32, %c0_i32_0 : i32, i32
  }
  func.func @transform_3(%arg0: i32) -> (i32, i32) {
    %c0_i32 = arith.constant 0 : i32
    %c0_i32_0 = arith.constant 0 : i32
    return %arg0, %c0_i32 : i32, i32
  }
}

module attributes {stable_mosaic.version = 11 : i64} {
  func.func @_dense_kernel(%arg0: i32, %arg1: memref<16x32xbf16, #tpu.memory_space<vmem>>, %arg2: memref<32x96xbf16, #tpu.memory_space<vmem>>, %arg3: memref<1x96xf32, #tpu.memory_space<vmem>>, %arg4: memref<16x96xbf16, #tpu.memory_space<vmem>>) attributes {dimension_semantics = [#tpu.dimension_semantics<parallel>], iteration_bounds = array<i64: 1>, scalar_prefetch = 0 : i64, scratch_operands = 0 : i64, tpu.core_type = #tpu.core_type<tc>, window_params = [{transform_indices = @transform_0, window_bounds = array<i64: 16, 32>}, {pipeline_mode = #tpu.pipeline_mode<synchronous>, transform_indices = @transform_1, window_bounds = array<i64: 32, 96>}, {pipeline_mode = #tpu.pipeline_mode<synchronous>, transform_indices = @transform_2, window_bounds = array<i64: 1, 96>}, {transform_indices = @transform_3, window_bounds = array<i64: 16, 96>}]} {
    %c0 = arith.constant 0 : index
    %c0_0 = arith.constant 0 : index
    %0 = vector.load %arg1[%c0, %c0_0] : memref<16x32xbf16, #tpu.memory_space<vmem>>, vector<16x32xbf16>
    %c0_1 = arith.constant 0 : index
    %c0_2 = arith.constant 0 : index
    %1 = vector.load %arg2[%c0_1, %c0_2] : memref<32x96xbf16, #tpu.memory_space<vmem>>, vector<32x96xbf16>
    %cst = arith.constant dense<0.000000e+00> : vector<16x96xf32>
    %2 = tpu.matmul %0, %1, %cst {dimension_numbers = #tpu.dot_dimension_numbers<[1], [0], [0], [1], [0, 0, 1, 1], [], []>} : vector<16x32xbf16>, vector<32x96xbf16>, vector<16x96xf32> -> vector<16x96xf32>
    %c0_3 = arith.constant 0 : index
    %c0_4 = arith.constant 0 : index
    %3 = vector.load %arg3[%c0_3, %c0_4] : memref<1x96xf32, #tpu.memory_space<vmem>>, vector<1x96xf32>
    %4 = vector.broadcast %3 : vector<1x96xf32> to vector<16x96xf32>
    %5 = arith.addf %2, %4 : vector<16x96xf32>
    %6 = arith.truncf %5 : vector<16x96xf32> to vector<16x96xbf16>
    %c0_5 = arith.constant 0 : index
    %c0_6 = arith.constant 0 : index
    %7 = vector.load %arg4[%c0_5, %c0_6] : memref<16x96xbf16, #tpu.memory_space<vmem>>, vector<16x96xbf16>
    tpu.vector_store %arg4[%c0_5, %c0_6], %6 {strides = array<i32>} : memref<16x96xbf16, #tpu.memory_space<vmem>>, vector<16x96xbf16>,
    return
  }
  func.func @transform_0(%arg0: i32) -> (i32, i32) {
    %c0_i32 = arith.constant 0 : i32
    %c0_i32_0 = arith.constant 0 : i32
    return %arg0, %c0_i32 : i32, i32
  }
  func.func @transform_1(%arg0: i32) -> (i32, i32) {
    %c0_i32 = arith.constant 0 : i32
    %c0_i32_0 = arith.constant 0 : i32
    %c0_i32_1 = arith.constant 0 : i32
    return %c0_i32, %c0_i32_0 : i32, i32
  }
  func.func @transform_2(%arg0: i32) -> (i32, i32) {
    %c0_i32 = arith.constant 0 : i32
    %c0_i32_0 = arith.constant 0 : i32
    %c0_i32_1 = arith.constant 0 : i32
    return %c0_i32, %c0_i32_0 : i32, i32
  }
  func.func @transform_3(%arg0: i32) -> (i32, i32) {
    %c0_i32 = arith.constant 0 : i32
    %c0_i32_0 = arith.constant 0 : i32
    return %arg0, %c0_i32 : i32, i32
  }
}

module attributes {stable_mosaic.version = 11 : i64} {
  func.func @_attn_kernel(%arg0: i32, %arg1: memref<1x8x96xbf16, #tpu.memory_space<vmem>>, %arg2: memref<1x1x8xf32, #tpu.memory_space<vmem>>, %arg3: memref<1x8x32xbf16, #tpu.memory_space<vmem>>) attributes {dimension_semantics = [#tpu.dimension_semantics<parallel>], iteration_bounds = array<i64: 2>, scalar_prefetch = 0 : i64, scratch_operands = 0 : i64, tpu.core_type = #tpu.core_type<tc>, window_params = [{transform_indices = @transform_0, window_bounds = array<i64: 1, 8, 96>}, {transform_indices = @transform_1, window_bounds = array<i64: 1, 1, 8>}, {transform_indices = @transform_2, window_bounds = array<i64: 1, 8, 32>}]} {
    %c0 = arith.constant 0 : index
    %c0_0 = arith.constant 0 : index
    %c0_1 = arith.constant 0 : index
    %0 = vector.load %arg1[%c0, %c0_0, %c0_1] : memref<1x8x96xbf16, #tpu.memory_space<vmem>>, vector<1x8x96xbf16>
    %1 = vector.shape_cast %0 : vector<1x8x96xbf16> to vector<8x96xbf16>
    %c0_2 = arith.constant 0 : index
    %c0_3 = arith.constant 0 : index
    %c0_4 = arith.constant 0 : index
    %2 = vector.load %arg2[%c0_2, %c0_3, %c0_4] : memref<1x1x8xf32, #tpu.memory_space<vmem>>, vector<1x1x8xf32>
    %3 = vector.shape_cast %2 : vector<1x1x8xf32> to vector<1x8xf32>
    %cst = arith.constant 1.000000e+00 : f32
    %4 = vector.broadcast %cst : f32 to vector<1x8xf32>
    %5 = arith.subf %4, %3 : vector<1x8xf32>
    %cst_5 = arith.constant -1.000000e+09 : f32
    %6 = vector.broadcast %cst_5 : f32 to vector<1x8xf32>
    %7 = arith.mulf %5, %6 : vector<1x8xf32>
    %8 = vector.extract_strided_slice %1 {offsets = [0, 0], sizes = [8, 8], strides = [1, 1]} : vector<8x96xbf16> to vector<8x8xbf16>
    %9 = vector.extract_strided_slice %1 {offsets = [0, 32], sizes = [8, 8], strides = [1, 1]} : vector<8x96xbf16> to vector<8x8xbf16>
    %10 = vector.extract_strided_slice %1 {offsets = [0, 64], sizes = [8, 8], strides = [1, 1]} : vector<8x96xbf16> to vector<8x8xbf16>
    %cst_6 = arith.constant dense<0.000000e+00> : vector<8x8xf32>
    %11 = tpu.matmul %8, %9, %cst_6 {dimension_numbers = #tpu.dot_dimension_numbers<[1], [1], [0], [0], [0, 0, 1, 0], [], []>} : vector<8x8xbf16>, vector<8x8xbf16>, vector<8x8xf32> -> vector<8x8xf32>
    %cst_7 = arith.constant 0.353553385 : f32
    %12 = vector.broadcast %cst_7 : f32 to vector<8x8xf32>
    %13 = arith.mulf %11, %12 : vector<8x8xf32>
    %14 = vector.broadcast %7 : vector<1x8xf32> to vector<8x8xf32>
    %15 = arith.addf %13, %14 : vector<8x8xf32>
    %cst_8 = arith.constant dense<0xFF800000> : vector<8xf32>
    %16 = vector.multi_reduction <maximumf>, %15, %cst_8 [1] : vector<8x8xf32> to vector<8xf32>
    %17 = vector.shape_cast %16 : vector<8xf32> to vector<8x1xf32>
    %18 = vector.broadcast %17 : vector<8x1xf32> to vector<8x8xf32>
    %19 = arith.subf %15, %18 : vector<8x8xf32>
    %20 = math.exp %19 : vector<8x8xf32>
    %cst_9 = arith.constant dense<0.000000e+00> : vector<8xf32>
    %21 = vector.multi_reduction <add>, %20, %cst_9 [1] : vector<8x8xf32> to vector<8xf32>
    %22 = vector.shape_cast %21 : vector<8xf32> to vector<8x1xf32>
    %23 = vector.broadcast %22 : vector<8x1xf32> to vector<8x8xf32>
    %24 = arith.divf %20, %23 : vector<8x8xf32>
    %25 = arith.truncf %24 : vector<8x8xf32> to vector<8x8xbf16>
    %cst_10 = arith.constant dense<0.000000e+00> : vector<8x8xf32>
    %26 = tpu.matmul %25, %10, %cst_10 {dimension_numbers = #tpu.dot_dimension_numbers<[1], [0], [0], [1], [0, 0, 1, 1], [], []>} : vector<8x8xbf16>, vector<8x8xbf16>, vector<8x8xf32> -> vector<8x8xf32>
    %27 = vector.extract_strided_slice %1 {offsets = [0, 8], sizes = [8, 8], strides = [1, 1]} : vector<8x96xbf16> to vector<8x8xbf16>
    %28 = vector.extract_strided_slice %1 {offsets = [0, 40], sizes = [8, 8], strides = [1, 1]} : vector<8x96xbf16> to vector<8x8xbf16>
    %29 = vector.extract_strided_slice %1 {offsets = [0, 72], sizes = [8, 8], strides = [1, 1]} : vector<8x96xbf16> to vector<8x8xbf16>
    %cst_11 = arith.constant dense<0.000000e+00> : vector<8x8xf32>
    %30 = tpu.matmul %27, %28, %cst_11 {dimension_numbers = #tpu.dot_dimension_numbers<[1], [1], [0], [0], [0, 0, 1, 0], [], []>} : vector<8x8xbf16>, vector<8x8xbf16>, vector<8x8xf32> -> vector<8x8xf32>
    %cst_12 = arith.constant 0.353553385 : f32
    %31 = vector.broadcast %cst_12 : f32 to vector<8x8xf32>
    %32 = arith.mulf %30, %31 : vector<8x8xf32>
    %33 = vector.broadcast %7 : vector<1x8xf32> to vector<8x8xf32>
    %34 = arith.addf %32, %33 : vector<8x8xf32>
    %cst_13 = arith.constant dense<0xFF800000> : vector<8xf32>
    %35 = vector.multi_reduction <maximumf>, %34, %cst_13 [1] : vector<8x8xf32> to vector<8xf32>
    %36 = vector.shape_cast %35 : vector<8xf32> to vector<8x1xf32>
    %37 = vector.broadcast %36 : vector<8x1xf32> to vector<8x8xf32>
    %38 = arith.subf %34, %37 : vector<8x8xf32>
    %39 = math.exp %38 : vector<8x8xf32>
    %cst_14 = arith.constant dense<0.000000e+00> : vector<8xf32>
    %40 = vector.multi_reduction <add>, %39, %cst_14 [1] : vector<8x8xf32> to vector<8xf32>
    %41 = vector.shape_cast %40 : vector<8xf32> to vector<8x1xf32>
    %42 = vector.broadcast %41 : vector<8x1xf32> to vector<8x8xf32>
    %43 = arith.divf %39, %42 : vector<8x8xf32>
    %44 = arith.truncf %43 : vector<8x8xf32> to vector<8x8xbf16>
    %cst_15 = arith.constant dense<0.000000e+00> : vector<8x8xf32>
    %45 = tpu.matmul %44, %29, %cst_15 {dimension_numbers = #tpu.dot_dimension_numbers<[1], [0], [0], [1], [0, 0, 1, 1], [], []>} : vector<8x8xbf16>, vector<8x8xbf16>, vector<8x8xf32> -> vector<8x8xf32>
    %46 = vector.extract_strided_slice %1 {offsets = [0, 16], sizes = [8, 8], strides = [1, 1]} : vector<8x96xbf16> to vector<8x8xbf16>
    %47 = vector.extract_strided_slice %1 {offsets = [0, 48], sizes = [8, 8], strides = [1, 1]} : vector<8x96xbf16> to vector<8x8xbf16>
    %48 = vector.extract_strided_slice %1 {offsets = [0, 80], sizes = [8, 8], strides = [1, 1]} : vector<8x96xbf16> to vector<8x8xbf16>
    %cst_16 = arith.constant dense<0.000000e+00> : vector<8x8xf32>
    %49 = tpu.matmul %46, %47, %cst_16 {dimension_numbers = #tpu.dot_dimension_numbers<[1], [1], [0], [0], [0, 0, 1, 0], [], []>} : vector<8x8xbf16>, vector<8x8xbf16>, vector<8x8xf32> -> vector<8x8xf32>
    %cst_17 = arith.constant 0.353553385 : f32
    %50 = vector.broadcast %cst_17 : f32 to vector<8x8xf32>
    %51 = arith.mulf %49, %50 : vector<8x8xf32>
    %52 = vector.broadcast %7 : vector<1x8xf32> to vector<8x8xf32>
    %53 = arith.addf %51, %52 : vector<8x8xf32>
    %cst_18 = arith.constant dense<0xFF800000> : vector<8xf32>
    %54 = vector.multi_reduction <maximumf>, %53, %cst_18 [1] : vector<8x8xf32> to vector<8xf32>
    %55 = vector.shape_cast %54 : vector<8xf32> to vector<8x1xf32>
    %56 = vector.broadcast %55 : vector<8x1xf32> to vector<8x8xf32>
    %57 = arith.subf %53, %56 : vector<8x8xf32>
    %58 = math.exp %57 : vector<8x8xf32>
    %cst_19 = arith.constant dense<0.000000e+00> : vector<8xf32>
    %59 = vector.multi_reduction <add>, %58, %cst_19 [1] : vector<8x8xf32> to vector<8xf32>
    %60 = vector.shape_cast %59 : vector<8xf32> to vector<8x1xf32>
    %61 = vector.broadcast %60 : vector<8x1xf32> to vector<8x8xf32>
    %62 = arith.divf %58, %61 : vector<8x8xf32>
    %63 = arith.truncf %62 : vector<8x8xf32> to vector<8x8xbf16>
    %cst_20 = arith.constant dense<0.000000e+00> : vector<8x8xf32>
    %64 = tpu.matmul %63, %48, %cst_20 {dimension_numbers = #tpu.dot_dimension_numbers<[1], [0], [0], [1], [0, 0, 1, 1], [], []>} : vector<8x8xbf16>, vector<8x8xbf16>, vector<8x8xf32> -> vector<8x8xf32>
    %65 = vector.extract_strided_slice %1 {offsets = [0, 24], sizes = [8, 8], strides = [1, 1]} : vector<8x96xbf16> to vector<8x8xbf16>
    %66 = vector.extract_strided_slice %1 {offsets = [0, 56], sizes = [8, 8], strides = [1, 1]} : vector<8x96xbf16> to vector<8x8xbf16>
    %67 = vector.extract_strided_slice %1 {offsets = [0, 88], sizes = [8, 8], strides = [1, 1]} : vector<8x96xbf16> to vector<8x8xbf16>
    %cst_21 = arith.constant dense<0.000000e+00> : vector<8x8xf32>
    %68 = tpu.matmul %65, %66, %cst_21 {dimension_numbers = #tpu.dot_dimension_numbers<[1], [1], [0], [0], [0, 0, 1, 0], [], []>} : vector<8x8xbf16>, vector<8x8xbf16>, vector<8x8xf32> -> vector<8x8xf32>
    %cst_22 = arith.constant 0.353553385 : f32
    %69 = vector.broadcast %cst_22 : f32 to vector<8x8xf32>
    %70 = arith.mulf %68, %69 : vector<8x8xf32>
    %71 = vector.broadcast %7 : vector<1x8xf32> to vector<8x8xf32>
    %72 = arith.addf %70, %71 : vector<8x8xf32>
    %cst_23 = arith.constant dense<0xFF800000> : vector<8xf32>
    %73 = vector.multi_reduction <maximumf>, %72, %cst_23 [1] : vector<8x8xf32> to vector<8xf32>
    %74 = vector.shape_cast %73 : vector<8xf32> to vector<8x1xf32>
    %75 = vector.broadcast %74 : vector<8x1xf32> to vector<8x8xf32>
    %76 = arith.subf %72, %75 : vector<8x8xf32>
    %77 = math.exp %76 : vector<8x8xf32>
    %cst_24 = arith.constant dense<0.000000e+00> : vector<8xf32>
    %78 = vector.multi_reduction <add>, %77, %cst_24 [1] : vector<8x8xf32> to vector<8xf32>
    %79 = vector.shape_cast %78 : vector<8xf32> to vector<8x1xf32>
    %80 = vector.broadcast %79 : vector<8x1xf32> to vector<8x8xf32>
    %81 = arith.divf %77, %80 : vector<8x8xf32>
    %82 = arith.truncf %81 : vector<8x8xf32> to vector<8x8xbf16>
    %cst_25 = arith.constant dense<0.000000e+00> : vector<8x8xf32>
    %83 = tpu.matmul %82, %67, %cst_25 {dimension_numbers = #tpu.dot_dimension_numbers<[1], [0], [0], [1], [0, 0, 1, 1], [], []>} : vector<8x8xbf16>, vector<8x8xbf16>, vector<8x8xf32> -> vector<8x8xf32>
    %84 = tpu.concatenate %26, %45, %64, %83 in 1 : vector<8x8xf32>, vector<8x8xf32>, vector<8x8xf32>, vector<8x8xf32> -> vector<8x32xf32>
    %85 = arith.truncf %84 : vector<8x32xf32> to vector<8x32xbf16>
    %c0_26 = arith.constant 0 : index
    %c0_27 = arith.constant 0 : index
    %c0_28 = arith.constant 0 : index
    %86 = vector.load %arg3[%c0_26, %c0_27, %c0_28] : memref<1x8x32xbf16, #tpu.memory_space<vmem>>, vector<1x8x32xbf16>
    %87 = vector.shape_cast %86 : vector<1x8x32xbf16> to vector<8x32xbf16>
    %88 = vector.shape_cast %85 : vector<8x32xbf16> to vector<1x8x32xbf16>
    tpu.vector_store %arg3[%c0_26, %c0_27, %c0_28], %88 {strides = array<i32>} : memref<1x8x32xbf16, #tpu.memory_space<vmem>>, vector<1x8x32xbf16>,
    return
  }
  func.func @transform_0(%arg0: i32) -> (i32, i32, i32) {
    %c0_i32 = arith.constant 0 : i32
    %c0_i32_0 = arith.constant 0 : i32
    %c0_i32_1 = arith.constant 0 : i32
    return %arg0, %c0_i32, %c0_i32_0 : i32, i32, i32
  }
  func.func @transform_1(%arg0: i32) -> (i32, i32, i32) {
    %c0_i32 = arith.constant 0 : i32
    %c0_i32_0 = arith.constant 0 : i32
    %c0_i32_1 = arith.constant 0 : i32
    return %arg0, %c0_i32, %c0_i32_0 : i32, i32, i32
  }
  func.func @transform_2(%arg0: i32) -> (i32, i32, i32) {
    %c0_i32 = arith.constant 0 : i32
    %c0_i32_0 = arith.constant 0 : i32
    %c0_i32_1 = arith.constant 0 : i32
    return %arg0, %c0_i32, %c0_i32_0 : i32, i32, i32
  }
}

module attributes {stable_mosaic.version = 11 : i64} {
  func.func @_dense_add_ln_kernel(%arg0: i32, %arg1: memref<16x32xbf16, #tpu.memory_space<vmem>>, %arg2: memref<32x32xbf16, #tpu.memory_space<vmem>>, %arg3: memref<1x32xf32, #tpu.memory_space<vmem>>, %arg4: memref<16x32xbf16, #tpu.memory_space<vmem>>, %arg5: memref<1x32xf32, #tpu.memory_space<vmem>>, %arg6: memref<1x32xf32, #tpu.memory_space<vmem>>, %arg7: memref<16x32xbf16, #tpu.memory_space<vmem>>) attributes {dimension_semantics = [#tpu.dimension_semantics<parallel>], iteration_bounds = array<i64: 1>, scalar_prefetch = 0 : i64, scratch_operands = 0 : i64, tpu.core_type = #tpu.core_type<tc>, window_params = [{transform_indices = @transform_0, window_bounds = array<i64: 16, 32>}, {pipeline_mode = #tpu.pipeline_mode<synchronous>, transform_indices = @transform_1, window_bounds = array<i64: 32, 32>}, {pipeline_mode = #tpu.pipeline_mode<synchronous>, transform_indices = @transform_2, window_bounds = array<i64: 1, 32>}, {transform_indices = @transform_3, window_bounds = array<i64: 16, 32>}, {pipeline_mode = #tpu.pipeline_mode<synchronous>, transform_indices = @transform_4, window_bounds = array<i64: 1, 32>}, {pipeline_mode = #tpu.pipeline_mode<synchronous>, transform_indices = @transform_5, window_bounds = array<i64: 1, 32>}, {transform_indices = @transform_6, window_bounds = array<i64: 16, 32>}]} {
    %c0 = arith.constant 0 : index
    %c0_0 = arith.constant 0 : index
    %0 = vector.load %arg1[%c0, %c0_0] : memref<16x32xbf16, #tpu.memory_space<vmem>>, vector<16x32xbf16>
    %c0_1 = arith.constant 0 : index
    %c0_2 = arith.constant 0 : index
    %1 = vector.load %arg2[%c0_1, %c0_2] : memref<32x32xbf16, #tpu.memory_space<vmem>>, vector<32x32xbf16>
    %cst = arith.constant dense<0.000000e+00> : vector<16x32xf32>
    %2 = tpu.matmul %0, %1, %cst {dimension_numbers = #tpu.dot_dimension_numbers<[1], [0], [0], [1], [0, 0, 1, 1], [], []>} : vector<16x32xbf16>, vector<32x32xbf16>, vector<16x32xf32> -> vector<16x32xf32>
    %c0_3 = arith.constant 0 : index
    %c0_4 = arith.constant 0 : index
    %3 = vector.load %arg3[%c0_3, %c0_4] : memref<1x32xf32, #tpu.memory_space<vmem>>, vector<1x32xf32>
    %4 = vector.broadcast %3 : vector<1x32xf32> to vector<16x32xf32>
    %5 = arith.addf %2, %4 : vector<16x32xf32>
    %c0_5 = arith.constant 0 : index
    %c0_6 = arith.constant 0 : index
    %6 = vector.load %arg4[%c0_5, %c0_6] : memref<16x32xbf16, #tpu.memory_space<vmem>>, vector<16x32xbf16>
    %7 = arith.extf %6 : vector<16x32xbf16> to vector<16x32xf32>
    %8 = arith.addf %5, %7 : vector<16x32xf32>
    %cst_7 = arith.constant dense<0.000000e+00> : vector<16xf32>
    %9 = vector.multi_reduction <add>, %8, %cst_7 [1] : vector<16x32xf32> to vector<16xf32>
    %10 = vector.shape_cast %9 : vector<16xf32> to vector<16x1xf32>
    %cst_8 = arith.constant 3.200000e+01 : f32
    %11 = vector.broadcast %cst_8 : f32 to vector<16x1xf32>
    %12 = arith.divf %10, %11 : vector<16x1xf32>
    %13 = vector.broadcast %12 : vector<16x1xf32> to vector<16x32xf32>
    %14 = arith.subf %8, %13 : vector<16x32xf32>
    %15 = arith.mulf %14, %14 : vector<16x32xf32>
    %cst_9 = arith.constant dense<0.000000e+00> : vector<16xf32>
    %16 = vector.multi_reduction <add>, %15, %cst_9 [1] : vector<16x32xf32> to vector<16xf32>
    %17 = vector.shape_cast %16 : vector<16xf32> to vector<16x1xf32>
    %cst_10 = arith.constant 3.200000e+01 : f32
    %18 = vector.broadcast %cst_10 : f32 to vector<16x1xf32>
    %19 = arith.divf %17, %18 : vector<16x1xf32>
    %cst_11 = arith.constant 9.99999996E-13 : f32
    %20 = vector.broadcast %cst_11 : f32 to vector<16x1xf32>
    %21 = arith.addf %19, %20 : vector<16x1xf32>
    %22 = math.rsqrt %21 : vector<16x1xf32>
    %23 = vector.broadcast %22 : vector<16x1xf32> to vector<16x32xf32>
    %24 = arith.mulf %14, %23 : vector<16x32xf32>
    %c0_12 = arith.constant 0 : index
    %c0_13 = arith.constant 0 : index
    %25 = vector.load %arg5[%c0_12, %c0_13] : memref<1x32xf32, #tpu.memory_space<vmem>>, vector<1x32xf32>
    %26 = vector.broadcast %25 : vector<1x32xf32> to vector<16x32xf32>
    %27 = arith.mulf %24, %26 : vector<16x32xf32>
    %c0_14 = arith.constant 0 : index
    %c0_15 = arith.constant 0 : index
    %28 = vector.load %arg6[%c0_14, %c0_15] : memref<1x32xf32, #tpu.memory_space<vmem>>, vector<1x32xf32>
    %29 = vector.broadcast %28 : vector<1x32xf32> to vector<16x32xf32>
    %30 = arith.addf %27, %29 : vector<16x32xf32>
    %31 = arith.truncf %30 : vector<16x32xf32> to vector<16x32xbf16>
    %c0_16 = arith.constant 0 : index
    %c0_17 = arith.constant 0 : index
    %32 = vector.load %arg7[%c0_16, %c0_17] : memref<16x32xbf16, #tpu.memory_space<vmem>>, vector<16x32xbf16>
    tpu.vector_store %arg7[%c0_16, %c0_17], %31 {strides = array<i32>} : memref<16x32xbf16, #tpu.memory_space<vmem>>, vector<16x32xbf16>,
    return
  }
  func.func @transform_0(%arg0: i32) -> (i32, i32) {
    %c0_i32 = arith.constant 0 : i32
    %c0_i32_0 = arith.constant 0 : i32
    return %arg0, %c0_i32 : i32, i32
  }
  func.func @transform_1(%arg0: i32) -> (i32, i32) {
    %c0_i32 = arith.constant 0 : i32
    %c0_i32_0 = arith.constant 0 : i32
    %c0_i32_1 = arith.constant 0 : i32
    return %c0_i32, %c0_i32_0 : i32, i32
  }
  func.func @transform_2(%arg0: i32) -> (i32, i32) {
    %c0_i32 = arith.constant 0 : i32
    %c0_i32_0 = arith.constant 0 : i32
    %c0_i32_1 = arith.constant 0 : i32
    return %c0_i32, %c0_i32_0 : i32, i32
  }
  func.func @transform_3(%arg0: i32) -> (i32, i32) {
    %c0_i32 = arith.constant 0 : i32
    %c0_i32_0 = arith.constant 0 : i32
    return %arg0, %c0_i32 : i32, i32
  }
  func.func @transform_4(%arg0: i32) -> (i32, i32) {
    %c0_i32 = arith.constant 0 : i32
    %c0_i32_0 = arith.constant 0 : i32
    %c0_i32_1 = arith.constant 0 : i32
    return %c0_i32, %c0_i32_0 : i32, i32
  }
  func.func @transform_5(%arg0: i32) -> (i32, i32) {
    %c0_i32 = arith.constant 0 : i32
    %c0_i32_0 = arith.constant 0 : i32
    %c0_i32_1 = arith.constant 0 : i32
    return %c0_i32, %c0_i32_0 : i32, i32
  }
  func.func @transform_6(%arg0: i32) -> (i32, i32) {
    %c0_i32 = arith.constant 0 : i32
    %c0_i32_0 = arith.constant 0 : i32
    return %arg0, %c0_i32 : i32, i32
  }
}

module attributes {stable_mosaic.version = 11 : i64} {
  func.func @_mean_pool_kernel(%arg0: i32, %arg1: memref<1x8x32xbf16, #tpu.memory_space<vmem>>, %arg2: memref<1x1x8xf32, #tpu.memory_space<vmem>>, %arg3: memref<1x1x32xf32, #tpu.memory_space<vmem>>) attributes {dimension_semantics = [#tpu.dimension_semantics<parallel>], iteration_bounds = array<i64: 2>, scalar_prefetch = 0 : i64, scratch_operands = 0 : i64, tpu.core_type = #tpu.core_type<tc>, window_params = [{transform_indices = @transform_0, window_bounds = array<i64: 1, 8, 32>}, {transform_indices = @transform_1, window_bounds = array<i64: 1, 1, 8>}, {transform_indices = @transform_2, window_bounds = array<i64: 1, 1, 32>}]} {
    %c0 = arith.constant 0 : index
    %c0_0 = arith.constant 0 : index
    %c0_1 = arith.constant 0 : index
    %0 = vector.load %arg1[%c0, %c0_0, %c0_1] : memref<1x8x32xbf16, #tpu.memory_space<vmem>>, vector<1x8x32xbf16>
    %1 = vector.shape_cast %0 : vector<1x8x32xbf16> to vector<8x32xbf16>
    %2 = arith.extf %1 : vector<8x32xbf16> to vector<8x32xf32>
    %c0_2 = arith.constant 0 : index
    %c0_3 = arith.constant 0 : index
    %c0_4 = arith.constant 0 : index
    %3 = vector.load %arg2[%c0_2, %c0_3, %c0_4] : memref<1x1x8xf32, #tpu.memory_space<vmem>>, vector<1x1x8xf32>
    %4 = vector.shape_cast %3 : vector<1x1x8xf32> to vector<1x8xf32>
    %cst = arith.constant dense<0.000000e+00> : vector<1x32xf32>
    %5 = tpu.matmul %4, %2, %cst {dimension_numbers = #tpu.dot_dimension_numbers<[1], [0], [0], [1], [0, 0, 1, 1], [], []>} : vector<1x8xf32>, vector<8x32xf32>, vector<1x32xf32> -> vector<1x32xf32>
    %cst_5 = arith.constant dense<0.000000e+00> : vector<1xf32>
    %6 = vector.multi_reduction <add>, %4, %cst_5 [1] : vector<1x8xf32> to vector<1xf32>
    %7 = vector.shape_cast %6 : vector<1xf32> to vector<1x1xf32>
    %cst_6 = arith.constant 9.99999971E-10 : f32
    %8 = vector.broadcast %cst_6 : f32 to vector<1x1xf32>
    %9 = arith.maximumf %7, %8 : vector<1x1xf32>
    %10 = vector.broadcast %9 : vector<1x1xf32> to vector<1x32xf32>
    %11 = arith.divf %5, %10 : vector<1x32xf32>
    %c0_7 = arith.constant 0 : index
    %c0_8 = arith.constant 0 : index
    %c0_9 = arith.constant 0 : index
    %12 = vector.load %arg3[%c0_7, %c0_8, %c0_9] : memref<1x1x32xf32, #tpu.memory_space<vmem>>, vector<1x1x32xf32>
    %13 = vector.shape_cast %12 : vector<1x1x32xf32> to vector<1x32xf32>
    %14 = vector.shape_cast %11 : vector<1x32xf32> to vector<1x1x32xf32>
    tpu.vector_store %arg3[%c0_7, %c0_8, %c0_9], %14 {strides = array<i32>} : memref<1x1x32xf32, #tpu.memory_space<vmem>>, vector<1x1x32xf32>,
    return
  }
  func.func @transform_0(%arg0: i32) -> (i32, i32, i32) {
    %c0_i32 = arith.constant 0 : i32
    %c0_i32_0 = arith.constant 0 : i32
    %c0_i32_1 = arith.constant 0 : i32
    return %arg0, %c0_i32, %c0_i32_0 : i32, i32, i32
  }
  func.func @transform_1(%arg0: i32) -> (i32, i32, i32) {
    %c0_i32 = arith.constant 0 : i32
    %c0_i32_0 = arith.constant 0 : i32
    %c0_i32_1 = arith.constant 0 : i32
    return %arg0, %c0_i32, %c0_i32_0 : i32, i32, i32
  }
  func.func @transform_2(%arg0: i32) -> (i32, i32, i32) {
    %c0_i32 = arith.constant 0 : i32
    %c0_i32_0 = arith.constant 0 : i32
    %c0_i32_1 = arith.constant 0 : i32
    return %arg0, %c0_i32, %c0_i32_0 : i32, i32, i32
  }
}

module attributes {stable_mosaic.version = 11 : i64} {
  func.func @_dense_kernel(%arg0: i32, %arg1: memref<16x32xbf16, #tpu.memory_space<vmem>>, %arg2: memref<32x64xbf16, #tpu.memory_space<vmem>>, %arg3: memref<1x64xf32, #tpu.memory_space<vmem>>, %arg4: memref<16x64xbf16, #tpu.memory_space<vmem>>) attributes {dimension_semantics = [#tpu.dimension_semantics<parallel>], iteration_bounds = array<i64: 1>, scalar_prefetch = 0 : i64, scratch_operands = 0 : i64, tpu.core_type = #tpu.core_type<tc>, window_params = [{transform_indices = @transform_0, window_bounds = array<i64: 16, 32>}, {pipeline_mode = #tpu.pipeline_mode<synchronous>, transform_indices = @transform_1, window_bounds = array<i64: 32, 64>}, {pipeline_mode = #tpu.pipeline_mode<synchronous>, transform_indices = @transform_2, window_bounds = array<i64: 1, 64>}, {transform_indices = @transform_3, window_bounds = array<i64: 16, 64>}]} {
    %c0 = arith.constant 0 : index
    %c0_0 = arith.constant 0 : index
    %0 = vector.load %arg1[%c0, %c0_0] : memref<16x32xbf16, #tpu.memory_space<vmem>>, vector<16x32xbf16>
    %c0_1 = arith.constant 0 : index
    %c0_2 = arith.constant 0 : index
    %1 = vector.load %arg2[%c0_1, %c0_2] : memref<32x64xbf16, #tpu.memory_space<vmem>>, vector<32x64xbf16>
    %cst = arith.constant dense<0.000000e+00> : vector<16x64xf32>
    %2 = tpu.matmul %0, %1, %cst {dimension_numbers = #tpu.dot_dimension_numbers<[1], [0], [0], [1], [0, 0, 1, 1], [], []>} : vector<16x32xbf16>, vector<32x64xbf16>, vector<16x64xf32> -> vector<16x64xf32>
    %c0_3 = arith.constant 0 : index
    %c0_4 = arith.constant 0 : index
    %3 = vector.load %arg3[%c0_3, %c0_4] : memref<1x64xf32, #tpu.memory_space<vmem>>, vector<1x64xf32>
    %4 = vector.broadcast %3 : vector<1x64xf32> to vector<16x64xf32>
    %5 = arith.addf %2, %4 : vector<16x64xf32>
    %cst_5 = arith.constant 5.000000e-01 : f32
    %6 = vector.broadcast %cst_5 : f32 to vector<16x64xf32>
    %7 = arith.mulf %6, %5 : vector<16x64xf32>
    %cst_6 = arith.constant 0.707106769 : f32
    %8 = vector.broadcast %cst_6 : f32 to vector<16x64xf32>
    %9 = arith.mulf %5, %8 : vector<16x64xf32>
    %10 = math.erf %9 : vector<16x64xf32>
    %cst_7 = arith.constant 1.000000e+00 : f32
    %11 = vector.broadcast %cst_7 : f32 to vector<16x64xf32>
    %12 = arith.addf %11, %10 : vector<16x64xf32>
    %13 = arith.mulf %7, %12 : vector<16x64xf32>
    %14 = arith.truncf %13 : vector<16x64xf32> to vector<16x64xbf16>
    %c0_8 = arith.constant 0 : index
    %c0_9 = arith.constant 0 : index
    %15 = vector.load %arg4[%c0_8, %c0_9] : memref<16x64xbf16, #tpu.memory_space<vmem>>, vector<16x64xbf16>
    tpu.vector_store %arg4[%c0_8, %c0_9], %14 {strides = array<i32>} : memref<16x64xbf16, #tpu.memory_space<vmem>>, vector<16x64xbf16>,
    return
  }
  func.func @transform_0(%arg0: i32) -> (i32, i32) {
    %c0_i32 = arith.constant 0 : i32
    %c0_i32_0 = arith.constant 0 : i32
    return %arg0, %c0_i32 : i32, i32
  }
  func.func @transform_1(%arg0: i32) -> (i32, i32) {
    %c0_i32 = arith.constant 0 : i32
    %c0_i32_0 = arith.constant 0 : i32
    %c0_i32_1 = arith.constant 0 : i32
    return %c0_i32, %c0_i32_0 : i32, i32
  }
  func.func @transform_2(%arg0: i32) -> (i32, i32) {
    %c0_i32 = arith.constant 0 : i32
    %c0_i32_0 = arith.constant 0 : i32
    %c0_i32_1 = arith.constant 0 : i32
    return %c0_i32, %c0_i32_0 : i32, i32
  }
  func.func @transform_3(%arg0: i32) -> (i32, i32) {
    %c0_i32 = arith.constant 0 : i32
    %c0_i32_0 = arith.constant 0 : i32
    return %arg0, %c0_i32 : i32, i32
  }
}

module attributes {stable_mosaic.version = 11 : i64} {
  func.func @_dense_add_ln_kernel(%arg0: i32, %arg1: memref<16x64xbf16, #tpu.memory_space<vmem>>, %arg2: memref<64x32xbf16, #tpu.memory_space<vmem>>, %arg3: memref<1x32xf32, #tpu.memory_space<vmem>>, %arg4: memref<16x32xbf16, #tpu.memory_space<vmem>>, %arg5: memref<1x32xf32, #tpu.memory_space<vmem>>, %arg6: memref<1x32xf32, #tpu.memory_space<vmem>>, %arg7: memref<16x32xbf16, #tpu.memory_space<vmem>>) attributes {dimension_semantics = [#tpu.dimension_semantics<parallel>], iteration_bounds = array<i64: 1>, scalar_prefetch = 0 : i64, scratch_operands = 0 : i64, tpu.core_type = #tpu.core_type<tc>, window_params = [{transform_indices = @transform_0, window_bounds = array<i64: 16, 64>}, {pipeline_mode = #tpu.pipeline_mode<synchronous>, transform_indices = @transform_1, window_bounds = array<i64: 64, 32>}, {pipeline_mode = #tpu.pipeline_mode<synchronous>, transform_indices = @transform_2, window_bounds = array<i64: 1, 32>}, {transform_indices = @transform_3, window_bounds = array<i64: 16, 32>}, {pipeline_mode = #tpu.pipeline_mode<synchronous>, transform_indices = @transform_4, window_bounds = array<i64: 1, 32>}, {pipeline_mode = #tpu.pipeline_mode<synchronous>, transform_indices = @transform_5, window_bounds = array<i64: 1, 32>}, {transform_indices = @transform_6, window_bounds = array<i64: 16, 32>}]} {
    %c0 = arith.constant 0 : index
    %c0_0 = arith.constant 0 : index
    %0 = vector.load %arg1[%c0, %c0_0] : memref<16x64xbf16, #tpu.memory_space<vmem>>, vector<16x64xbf16>
    %c0_1 = arith.constant 0 : index
    %c0_2 = arith.constant 0 : index
    %1 = vector.load %arg2[%c0_1, %c0_2] : memref<64x32xbf16, #tpu.memory_space<vmem>>, vector<64x32xbf16>
    %cst = arith.constant dense<0.000000e+00> : vector<16x32xf32>
    %2 = tpu.matmul %0, %1, %cst {dimension_numbers = #tpu.dot_dimension_numbers<[1], [0], [0], [1], [0, 0, 1, 1], [], []>} : vector<16x64xbf16>, vector<64x32xbf16>, vector<16x32xf32> -> vector<16x32xf32>
    %c0_3 = arith.constant 0 : index
    %c0_4 = arith.constant 0 : index
    %3 = vector.load %arg3[%c0_3, %c0_4] : memref<1x32xf32, #tpu.memory_space<vmem>>, vector<1x32xf32>
    %4 = vector.broadcast %3 : vector<1x32xf32> to vector<16x32xf32>
    %5 = arith.addf %2, %4 : vector<16x32xf32>
    %c0_5 = arith.constant 0 : index
    %c0_6 = arith.constant 0 : index
    %6 = vector.load %arg4[%c0_5, %c0_6] : memref<16x32xbf16, #tpu.memory_space<vmem>>, vector<16x32xbf16>
    %7 = arith.extf %6 : vector<16x32xbf16> to vector<16x32xf32>
    %8 = arith.addf %5, %7 : vector<16x32xf32>
    %cst_7 = arith.constant dense<0.000000e+00> : vector<16xf32>
    %9 = vector.multi_reduction <add>, %8, %cst_7 [1] : vector<16x32xf32> to vector<16xf32>
    %10 = vector.shape_cast %9 : vector<16xf32> to vector<16x1xf32>
    %cst_8 = arith.constant 3.200000e+01 : f32
    %11 = vector.broadcast %cst_8 : f32 to vector<16x1xf32>
    %12 = arith.divf %10, %11 : vector<16x1xf32>
    %13 = vector.broadcast %12 : vector<16x1xf32> to vector<16x32xf32>
    %14 = arith.subf %8, %13 : vector<16x32xf32>
    %15 = arith.mulf %14, %14 : vector<16x32xf32>
    %cst_9 = arith.constant dense<0.000000e+00> : vector<16xf32>
    %16 = vector.multi_reduction <add>, %15, %cst_9 [1] : vector<16x32xf32> to vector<16xf32>
    %17 = vector.shape_cast %16 : vector<16xf32> to vector<16x1xf32>
    %cst_10 = arith.constant 3.200000e+01 : f32
    %18 = vector.broadcast %cst_10 : f32 to vector<16x1xf32>
    %19 = arith.divf %17, %18 : vector<16x1xf32>
    %cst_11 = arith.constant 9.99999996E-13 : f32
    %20 = vector.broadcast %cst_11 : f32 to vector<16x1xf32>
    %21 = arith.addf %19, %20 : vector<16x1xf32>
    %22 = math.rsqrt %21 : vector<16x1xf32>
    %23 = vector.broadcast %22 : vector<16x1xf32> to vector<16x32xf32>
    %24 = arith.mulf %14, %23 : vector<16x32xf32>
    %c0_12 = arith.constant 0 : index
    %c0_13 = arith.constant 0 : index
    %25 = vector.load %arg5[%c0_12, %c0_13] : memref<1x32xf32, #tpu.memory_space<vmem>>, vector<1x32xf32>
    %26 = vector.broadcast %25 : vector<1x32xf32> to vector<16x32xf32>
    %27 = arith.mulf %24, %26 : vector<16x32xf32>
    %c0_14 = arith.constant 0 : index
    %c0_15 = arith.constant 0 : index
    %28 = vector.load %arg6[%c0_14, %c0_15] : memref<1x32xf32, #tpu.memory_space<vmem>>, vector<1x32xf32>
    %29 = vector.broadcast %28 : vector<1x32xf32> to vector<16x32xf32>
    %30 = arith.addf %27, %29 : vector<16x32xf32>
    %31 = arith.truncf %30 : vector<16x32xf32> to vector<16x32xbf16>
    %c0_16 = arith.constant 0 : index
    %c0_17 = arith.constant 0 : index
    %32 = vector.load %arg7[%c0_16, %c0_17] : memref<16x32xbf16, #tpu.memory_space<vmem>>, vector<16x32xbf16>
    tpu.vector_store %arg7[%c0_16, %c0_17], %31 {strides = array<i32>} : memref<16x32xbf16, #tpu.memory_space<vmem>>, vector<16x32xbf16>,
    return
  }
  func.func @transform_0(%arg0: i32) -> (i32, i32) {
    %c0_i32 = arith.constant 0 : i32
    %c0_i32_0 = arith.constant 0 : i32
    return %arg0, %c0_i32 : i32, i32
  }
  func.func @transform_1(%arg0: i32) -> (i32, i32) {
    %c0_i32 = arith.constant 0 : i32
    %c0_i32_0 = arith.constant 0 : i32
    %c0_i32_1 = arith.constant 0 : i32
    return %c0_i32, %c0_i32_0 : i32, i32
  }
  func.func @transform_2(%arg0: i32) -> (i32, i32) {
    %c0_i32 = arith.constant 0 : i32
    %c0_i32_0 = arith.constant 0 : i32
    %c0_i32_1 = arith.constant 0 : i32
    return %c0_i32, %c0_i32_0 : i32, i32
  }
  func.func @transform_3(%arg0: i32) -> (i32, i32) {
    %c0_i32 = arith.constant 0 : i32
    %c0_i32_0 = arith.constant 0 : i32
    return %arg0, %c0_i32 : i32, i32
  }
  func.func @transform_4(%arg0: i32) -> (i32, i32) {
    %c0_i32 = arith.constant 0 : i32
    %c0_i32_0 = arith.constant 0 : i32
    %c0_i32_1 = arith.constant 0 : i32
    return %c0_i32, %c0_i32_0 : i32, i32
  }
  func.func @transform_5(%arg0: i32) -> (i32, i32) {
    %c0_i32 = arith.constant 0 : i32
    %c0_i32_0 = arith.constant 0 : i32
    %c0_i32_1 = arith.constant 0 : i32
    return %c0_i32, %c0_i32_0 : i32, i32
  }
  func.func @transform_6(%arg0: i32) -> (i32, i32) {
    %c0_i32 = arith.constant 0 : i32
    %c0_i32_0 = arith.constant 0 : i32
    return %arg0, %c0_i32 : i32, i32
  }
}

</mosaic_0001>

<llo_original>
// kernel: sbert_forward.12
$region0: #{sbert_forward.12}
  #allocation0 [shape = 'u32[]', space=smem, size = 0x4, offset = 0x4, fixed_abs, tag = 'smem constant byte address 0x4 - core index']
  #allocation1 [shape = 'u32[144,128]{1,0:T(1,128)}', space=vmem, size = 0x12000, scoped, tag = 'internal scratch']
  %s0 = inlined_call_operand.vmem [shape: f32[16,32], index: 0, kind: input, shape index: {}]
  %s1 = inlined_call_operand.vmem [shape: f32[1,32], index: 1, kind: input, shape index: {}]
  %s2 = inlined_call_operand.vmem [shape: f32[1,32], index: 2, kind: input, shape index: {}]
  %s3 = inlined_call_operand.vmem [shape: bf16[16,32], index: 3, kind: output, shape index: {}]
  %s4 = sld [smem:[#allocation0]]
  $region22: #{sbert_forward.12} parent=0
    _
  %s6 = ssub.s32 1, %s4
  %s7 = scalar_select 0, %s6, %s4
  // Predicated region
  $region2: #{sbert_forward.12} parent=0 // pred_check
    _
  $region3: #{sbert_forward.12} parent=0 // pred_check_branch
    %9 = sbr.rel (0) target = $region5
  $region4: #{sbert_forward.12} parent=0 // pred_region
    _
  $region5: #{sbert_forward.12} parent=0 // pred_fallthru
    _
  // Predicated region
  $region6: #{sbert_forward.12} parent=0 // pred_check
    _
  $region7: #{sbert_forward.12} parent=0 // pred_check_branch
    %11 = sbr.rel (0) target = $region9
  $region8: #{sbert_forward.12} parent=0 // pred_region
    _
  $region9: #{sbert_forward.12} parent=0 // pred_fallthru
    _
  // Predicated region
  $region10: #{sbert_forward.12} parent=0 // pred_check
    _
  $region11: #{sbert_forward.12} parent=0 // pred_check_branch
    %13 = sbr.rel (0) target = $region13
  $region12: #{sbert_forward.12} parent=0 // pred_region
    _
  $region13: #{sbert_forward.12} parent=0 // pred_fallthru
    _
  %v14 = vld [vmem:[%s0] sm:$0xff]
  %v15 = vld [vmem:[%s0 + $0x8] sm:$0xff]
  %vm16 = vcmask 261120
  %v17 = vsel %vm16, %v14, 0.0
  %18 = vadd.xlane.f32.xlu0 %v17
  %v19 = vpop.xlane.xlu0 %18
  %v20 = vsel %vm16, %v15, 0.0
  %21 = vadd.xlane.f32.xlu0 %v20
  %v22 = vpop.xlane.xlu0 %21
  %v23 = vrcp.pop 32.0
  %v24 = vmul.f32 %v19, %v23
  %v25 = vmul.f32 %v22, %v23
  %v26 = vsub.f32 %v14, %v24
  %v27 = vsub.f32 %v15, %v25
  %v28 = vmul.f32 %v26, %v26
  %v29 = vmul.f32 %v27, %v27
  %v30 = vsel %vm16, %v28, 0.0
  %31 = vadd.xlane.f32.xlu0 %v30
  %v32 = vpop.xlane.xlu0 %31
  %v33 = vsel %vm16, %v29, 0.0
  %34 = vadd.xlane.f32.xlu0 %v33
  %v35 = vpop.xlane.xlu0 %34
  %v36 = vmul.f32 %v32, %v23
  %v37 = vmul.f32 %v35, %v23
  %v38 = vadd.f32 %v36, 1e-12
  %v39 = vadd.f32 %v37, 1e-12
  %v40 = vrsqrt.pop %v38
  %v41 = vrsqrt.pop %v39
  %v42 = vmul.f32 %v26, %v40
  %v43 = vmul.f32 %v27, %v41
  %v44 = vld [vmem:[%s1] sm:$0x1]
  %v46 = vlaneseq
  %v47 = vshrl.u32 %v46, 7
  %v48 = vsub.s32 0, %v47
  %v49 = vrot.slane %v44, %v48
  %v51 = vmul.f32 %v42, %v49
  %v52 = vmul.f32 %v43, %v49
  %v53 = vld [vmem:[%s2] sm:$0x1]
  %v55 = vlaneseq
  %v56 = vshrl.u32 %v55, 7
  %v57 = vsub.s32 0, %v56
  %v58 = vrot.slane %v53, %v57
  %v60 = vadd.f32 %v51, %v58
  %v61 = vadd.f32 %v52, %v58
  %v62 = vpack.c.bf16 %v61, %v60
  %v64 = vunpack.c.l.b16 %v62
  %v65 = vunpack.c.h.b16 %v62
  %v66 = vpack.c.b16 %v64, %v64
  %v67 = vpack.c.b16 %v65, %v65
  %vm70 = vcmask 257024
  %71 = vst.msk [vmem:[%s3] sm:$0xf] %vm70, %v66
  %72 = vst.msk [vmem:[%s3 + $0x4] sm:$0xf] %vm70, %v67
  // Predicated region
  $region14: #{sbert_forward.12} parent=0 // pred_check
    _
  $region15: #{sbert_forward.12} parent=0 // pred_check_branch
    %74 = sbr.rel (0) target = $region17
  $region16: #{sbert_forward.12} parent=0 // pred_region
    _
  $region17: #{sbert_forward.12} parent=0 // pred_fallthru
    _
  // Predicated region
  $region18: #{sbert_forward.12} parent=0 // pred_check
    _
  $region19: #{sbert_forward.12} parent=0 // pred_check_branch
    %76 = sbr.rel (0) target = $region21
  $region20: #{sbert_forward.12} parent=0 // pred_region
    _
  $region21: #{sbert_forward.12} parent=0 // pred_fallthru
    _

// kernel: sbert_forward.15
$region0: #{sbert_forward.15}
  #allocation0 [shape = 'u32[]', space=smem, size = 0x4, offset = 0x4, fixed_abs, tag = 'smem constant byte address 0x4 - core index']
  #allocation1 [shape = 'u32[144,128]{1,0:T(1,128)}', space=vmem, size = 0x12000, scoped, tag = 'internal scratch']
  %s0 = inlined_call_operand.vmem [shape: bf16[16,32], index: 0, kind: input, shape index: {}]
  %s1 = inlined_call_operand.vmem [shape: bf16[32,32], index: 1, kind: input, shape index: {}]
  %s2 = inlined_call_operand.vmem [shape: f32[1,32], index: 2, kind: input, shape index: {}]
  %s3 = inlined_call_operand.vmem [shape: bf16[16,32], index: 3, kind: input, shape index: {}]
  %s4 = inlined_call_operand.vmem [shape: f32[1,32], index: 4, kind: input, shape index: {}]
  %s5 = inlined_call_operand.vmem [shape: f32[1,32], index: 5, kind: input, shape index: {}]
  %s6 = inlined_call_operand.vmem [shape: bf16[16,32], index: 6, kind: output, shape index: {}]
  %s7 = sld [smem:[#allocation0]]
  $region34: #{sbert_forward.15} parent=0
    _
  %s9 = ssub.s32 1, %s7
  %s10 = scalar_select 0, %s9, %s7
  // Predicated region
  $region2: #{sbert_forward.15} parent=0 // pred_check
    _
  $region3: #{sbert_forward.15} parent=0 // pred_check_branch
    %12 = sbr.rel (0) target = $region5
  $region4: #{sbert_forward.15} parent=0 // pred_region
    _
  $region5: #{sbert_forward.15} parent=0 // pred_fallthru
    _
  // Predicated region
  $region6: #{sbert_forward.15} parent=0 // pred_check
    _
  $region7: #{sbert_forward.15} parent=0 // pred_check_branch
    %14 = sbr.rel (0) target = $region9
  $region8: #{sbert_forward.15} parent=0 // pred_region
    _
  $region9: #{sbert_forward.15} parent=0 // pred_fallthru
    _
  // Predicated region
  $region10: #{sbert_forward.15} parent=0 // pred_check
    _
  $region11: #{sbert_forward.15} parent=0 // pred_check_branch
    %16 = sbr.rel (0) target = $region13
  $region12: #{sbert_forward.15} parent=0 // pred_region
    _
  $region13: #{sbert_forward.15} parent=0 // pred_fallthru
    _
  // Predicated region
  $region14: #{sbert_forward.15} parent=0 // pred_check
    _
  $region15: #{sbert_forward.15} parent=0 // pred_check_branch
    %18 = sbr.rel (0) target = $region17
  $region16: #{sbert_forward.15} parent=0 // pred_region
    _
  $region17: #{sbert_forward.15} parent=0 // pred_fallthru
    _
  // Predicated region
  $region18: #{sbert_forward.15} parent=0 // pred_check
    _
  $region19: #{sbert_forward.15} parent=0 // pred_check_branch
    %20 = sbr.rel (0) target = $region21
  $region20: #{sbert_forward.15} parent=0 // pred_region
    _
  $region21: #{sbert_forward.15} parent=0 // pred_fallthru
    _
  // Predicated region
  $region22: #{sbert_forward.15} parent=0 // pred_check
    _
  $region23: #{sbert_forward.15} parent=0 // pred_check_branch
    %22 = sbr.rel (0) target = $region25
  $region24: #{sbert_forward.15} parent=0 // pred_region
    _
  $region25: #{sbert_forward.15} parent=0 // pred_fallthru
    _
  %v24 = vld [vmem:[%s0] sm:$0xf]
  %v25 = vld [vmem:[%s0 + $0x4] sm:$0xf]
  %v26 = vld [vmem:[%s1] sm:$0xf]
  %v27 = vld [vmem:[%s1 + $0x4] sm:$0xf]
  %v28 = vld [vmem:[%s1 + $0x8] sm:$0xf]
  %v29 = vld [vmem:[%s1 + $0xc] sm:$0xf]
  %v30 = vld [vmem:[%s2] sm:$0x1]
  %v32 = vlaneseq
  %v33 = vshrl.u32 %v32, 7
  %v34 = vsub.s32 0, %v33
  %v35 = vrot.slane %v30, %v34
  %v39 = vunpack.c.l.b16 %v24
  %v40 = vunpack.c.l.b16 %v25
  %v41 = vpack.c.b16 %v40, %v39
  %v46 = vunpack.c.l.b16 %v26
  %v47 = vunpack.c.l.b16 %v27
  %v48 = vunpack.c.l.b16 %v28
  %v49 = vunpack.c.l.b16 %v29
  %v50 = vpack.c.b16 %v47, %v46
  %v51 = vpack.c.b16 %v49, %v48
  %vm54 = vcmask 261120
  %v56 = vsel %vm54, %v41, 0
  %58 = vmatprep.subr.bf16.mxu0 0
  %59 = vmatpush1.bf16.msra.mxu0 0
  %60 = vmatprep.subr.bf16.mxu0 0
  %61 = vmatpush1.bf16.msra.mxu0 0
  %62 = vmatprep.subr.bf16.mxu0 0
  %63 = vmatpush1.bf16.msra.mxu0 0
  %64 = vmatprep.subr.bf16.mxu0 0
  %65 = vmatpush1.bf16.msra.mxu0 0
  %66 = vmatprep.subr.bf16.mxu0 0
  %67 = vmatpush1.bf16.msra.mxu0 0
  %68 = vmatprep.subr.bf16.mxu0 0
  %69 = vmatpush1.bf16.msra.mxu0 0
  %70 = vmatprep.subr.bf16.mxu0 0
  %71 = vmatpush1.bf16.msra.mxu0 %v51
  %72 = vmatprep.subr.bf16.mxu0 0
  %73 = vmatpush1.bf16.msra.mxu0 %v50
  %74 = vmatprep.subr.bf16.mxu0 0
  %75 = vmatpush2.bf16.msra.mxu0 0
  %76 = vmatprep.subr.bf16.mxu0 0
  %77 = vmatpush2.bf16.msra.mxu0 0
  %78 = vmatprep.subr.bf16.mxu0 0
  %79 = vmatpush2.bf16.msra.mxu0 0
  %80 = vmatprep.subr.bf16.mxu0 0
  %81 = vmatpush2.bf16.msra.mxu0 0
  %82 = vmatprep.subr.bf16.mxu0 0
  %83 = vmatpush2.bf16.msra.mxu0 0
  %84 = vmatprep.subr.bf16.mxu0 0
  %85 = vmatpush2.bf16.msra.mxu0 0
  %86 = vmatprep.subr.bf16.mxu0 0
  %87 = vmatpush2.bf16.msra.mxu0 0
  %88 = vmatprep.subr.bf16.mxu0 0
  %89 = vmatpush2.bf16.msra.mxu0 0
  %90 = vmatprep.mubr.bf16.mxu0 0
  %91 = vmatmul.mubr.bf16.gmra.mxu0 %v56
  %v92 = vpop.f32.mrf.mxu0
  %v93 = vadd.f32 %v35, %v92
  %v94 = vpop.f32.mrf.mxu0
  %v95 = vpop.f32.mrf.mxu0
  %v96 = vadd.f32 %v35, %v95
  %v97 = vpop.f32.mrf.mxu0
  %98 = vdwg.mxu0
  %v99 = vld [vmem:[%s3] sm:$0xf]
  %v100 = vld [vmem:[%s3 + $0x4] sm:$0xf]
  %v101 = vunpack.c.l.bf16 %v99
  %v102 = vunpack.c.l.bf16 %v100
  %v103 = vadd.f32 %v93, %v101
  %v104 = vadd.f32 %v96, %v102
  %v105 = vsel %vm54, %v103, 0.0
  %106 = vadd.xlane.f32.xlu0 %v105
  %v107 = vpop.xlane.xlu0 %106
  %v108 = vsel %vm54, %v104, 0.0
  %109 = vadd.xlane.f32.xlu0 %v108
  %v110 = vpop.xlane.xlu0 %109
  %v111 = vrcp.pop 32.0
  %v112 = vmul.f32 %v107, %v111
  %v113 = vmul.f32 %v110, %v111
  %v114 = vsub.f32 %v103, %v112
  %v115 = vsub.f32 %v104, %v113
  %v116 = vmul.f32 %v114, %v114
  %v117 = vmul.f32 %v115, %v115
  %v118 = vsel %vm54, %v116, 0.0
  %119 = vadd.xlane.f32.xlu0 %v118
  %v120 = vpop.xlane.xlu0 %119
  %v121 = vsel %vm54, %v117, 0.0
  %122 = vadd.xlane.f32.xlu0 %v121
  %v123 = vpop.xlane.xlu0 %122
  %v124 = vmul.f32 %v120, %v111
  %v125 = vmul.f32 %v123, %v111
  %v126 = vadd.f32 %v124, 1e-12
  %v127 = vadd.f32 %v125, 1e-12
  %v128 = vrsqrt.pop %v126
  %v129 = vrsqrt.pop %v127
  %v130 = vmul.f32 %v114, %v128
  %v131 = vmul.f32 %v115, %v129
  %v132 = vld [vmem:[%s4] sm:$0x1]
  %v134 = vlaneseq
  %v135 = vshrl.u32 %v134, 7
  %v136 = vsub.s32 0, %v135
  %v137 = vrot.slane %v132, %v136
  %v139 = vmul.f32 %v130, %v137
  %v140 = vmul.f32 %v131, %v137
  %v141 = vld [vmem:[%s5] sm:$0x1]
  %v143 = vlaneseq
  %v144 = vshrl.u32 %v143, 7
  %v145 = vsub.s32 0, %v144
  %v146 = vrot.slane %v141, %v145
  %v148 = vadd.f32 %v139, %v146
  %v149 = vadd.f32 %v140, %v146
  %v150 = vpack.c.bf16 %v149, %v148
  %v152 = vunpack.c.l.b16 %v150
  %v153 = vunpack.c.h.b16 %v150
  %v154 = vpack.c.b16 %v152, %v152
  %v155 = vpack.c.b16 %v153, %v153
  %vm158 = vcmask 257024
  %159 = vst.msk [vmem:[%s6] sm:$0xf] %vm158, %v154
  %160 = vst.msk [vmem:[%s6 + $0x4] sm:$0xf] %vm158, %v155
  // Predicated region
  $region26: #{sbert_forward.15} parent=0 // pred_check
    _
  $region27: #{sbert_forward.15} parent=0 // pred_check_branch
    %162 = sbr.rel (0) target = $region29
  $region28: #{sbert_forward.15} parent=0 // pred_region
    _
  $region29: #{sbert_forward.15} parent=0 // pred_fallthru
    _
  // Predicated region
  $region30: #{sbert_forward.15} parent=0 // pred_check
    _
  $region31: #{sbert_forward.15} parent=0 // pred_check_branch
    %164 = sbr.rel (0) target = $region33
  $region32: #{sbert_forward.15} parent=0 // pred_region
    _
  $region33: #{sbert_forward.15} parent=0 // pred_fallthru
    _

// kernel: sbert_forward.13
$region0: #{sbert_forward.13}
  #allocation0 [shape = 'u32[]', space=smem, size = 0x4, offset = 0x4, fixed_abs, tag = 'smem constant byte address 0x4 - core index']
  #allocation1 [shape = 'u32[144,128]{1,0:T(1,128)}', space=vmem, size = 0x12000, scoped, tag = 'internal scratch']
  %s0 = inlined_call_operand.vmem [shape: bf16[16,32], index: 0, kind: input, shape index: {}]
  %s1 = inlined_call_operand.vmem [shape: bf16[32,96], index: 1, kind: input, shape index: {}]
  %s2 = inlined_call_operand.vmem [shape: f32[1,96], index: 2, kind: input, shape index: {}]
  %s3 = inlined_call_operand.vmem [shape: bf16[16,96], index: 3, kind: output, shape index: {}]
  %s4 = sld [smem:[#allocation0]]
  $region22: #{sbert_forward.13} parent=0
    _
  %s6 = ssub.s32 1, %s4
  %s7 = scalar_select 0, %s6, %s4
  // Predicated region
  $region2: #{sbert_forward.13} parent=0 // pred_check
    _
  $region3: #{sbert_forward.13} parent=0 // pred_check_branch
    %9 = sbr.rel (0) target = $region5
  $region4: #{sbert_forward.13} parent=0 // pred_region
    _
  $region5: #{sbert_forward.13} parent=0 // pred_fallthru
    _
  // Predicated region
  $region6: #{sbert_forward.13} parent=0 // pred_check
    _
  $region7: #{sbert_forward.13} parent=0 // pred_check_branch
    %11 = sbr.rel (0) target = $region9
  $region8: #{sbert_forward.13} parent=0 // pred_region
    _
  $region9: #{sbert_forward.13} parent=0 // pred_fallthru
    _
  // Predicated region
  $region10: #{sbert_forward.13} parent=0 // pred_check
    _
  $region11: #{sbert_forward.13} parent=0 // pred_check_branch
    %13 = sbr.rel (0) target = $region13
  $region12: #{sbert_forward.13} parent=0 // pred_region
    _
  $region13: #{sbert_forward.13} parent=0 // pred_fallthru
    _
  %v15 = vld [vmem:[%s0] sm:$0xf]
  %v16 = vld [vmem:[%s0 + $0x4] sm:$0xf]
  %v17 = vld [vmem:[%s1] sm:$0xf]
  %v18 = vld [vmem:[%s1 + $0x4] sm:$0xf]
  %v19 = vld [vmem:[%s1 + $0x8] sm:$0xf]
  %v20 = vld [vmem:[%s1 + $0xc] sm:$0xf]
  %v21 = vld [vmem:[%s2] sm:$0x1]
  %v23 = vlaneseq
  %v24 = vshrl.u32 %v23, 7
  %v25 = vsub.s32 0, %v24
  %v26 = vrot.slane %v21, %v25
  %v30 = vunpack.c.l.b16 %v15
  %v31 = vunpack.c.l.b16 %v16
  %v32 = vpack.c.b16 %v31, %v30
  %v37 = vunpack.c.l.b16 %v17
  %v38 = vunpack.c.l.b16 %v18
  %v39 = vunpack.c.l.b16 %v19
  %v40 = vunpack.c.l.b16 %v20
  %v41 = vpack.c.b16 %v38, %v37
  %v42 = vpack.c.b16 %v40, %v39
  %vm45 = vcmask 261120
  %v47 = vsel %vm45, %v32, 0
  %49 = vmatprep.subr.bf16.mxu0 0
  %50 = vmatpush1.bf16.msra.mxu0 0
  %51 = vmatprep.subr.bf16.mxu0 0
  %52 = vmatpush1.bf16.msra.mxu0 0
  %53 = vmatprep.subr.bf16.mxu0 0
  %54 = vmatpush1.bf16.msra.mxu0 0
  %55 = vmatprep.subr.bf16.mxu0 0
  %56 = vmatpush1.bf16.msra.mxu0 0
  %57 = vmatprep.subr.bf16.mxu0 0
  %58 = vmatpush1.bf16.msra.mxu0 0
  %59 = vmatprep.subr.bf16.mxu0 0
  %60 = vmatpush1.bf16.msra.mxu0 0
  %61 = vmatprep.subr.bf16.mxu0 0
  %62 = vmatpush1.bf16.msra.mxu0 %v42
  %63 = vmatprep.subr.bf16.mxu0 0
  %64 = vmatpush1.bf16.msra.mxu0 %v41
  %65 = vmatprep.subr.bf16.mxu0 0
  %66 = vmatpush2.bf16.msra.mxu0 0
  %67 = vmatprep.subr.bf16.mxu0 0
  %68 = vmatpush2.bf16.msra.mxu0 0
  %69 = vmatprep.subr.bf16.mxu0 0
  %70 = vmatpush2.bf16.msra.mxu0 0
  %71 = vmatprep.subr.bf16.mxu0 0
  %72 = vmatpush2.bf16.msra.mxu0 0
  %73 = vmatprep.subr.bf16.mxu0 0
  %74 = vmatpush2.bf16.msra.mxu0 0
  %75 = vmatprep.subr.bf16.mxu0 0
  %76 = vmatpush2.bf16.msra.mxu0 0
  %77 = vmatprep.subr.bf16.mxu0 0
  %78 = vmatpush2.bf16.msra.mxu0 0
  %79 = vmatprep.subr.bf16.mxu0 0
  %80 = vmatpush2.bf16.msra.mxu0 0
  %81 = vmatprep.mubr.bf16.mxu0 0
  %82 = vmatmul.mubr.bf16.gmra.mxu0 %v47
  %v83 = vpop.f32.mrf.mxu0
  %v84 = vadd.f32 %v26, %v83
  %v85 = vpop.f32.mrf.mxu0
  %v86 = vpop.f32.mrf.mxu0
  %v87 = vadd.f32 %v26, %v86
  %v88 = vpop.f32.mrf.mxu0
  %89 = vdwg.mxu0
  %v90 = vpack.c.bf16 %v87, %v84
  %v92 = vunpack.c.l.b16 %v90
  %v93 = vunpack.c.h.b16 %v90
  %v94 = vpack.c.b16 %v92, %v92
  %v95 = vpack.c.b16 %v93, %v93
  %vm98 = vcmask 781312
  %99 = vst.msk [vmem:[%s3] sm:$0xf] %vm98, %v94
  %100 = vst.msk [vmem:[%s3 + $0x4] sm:$0xf] %vm98, %v95
  // Predicated region
  $region14: #{sbert_forward.13} parent=0 // pred_check
    _
  $region15: #{sbert_forward.13} parent=0 // pred_check_branch
    %102 = sbr.rel (0) target = $region17
  $region16: #{sbert_forward.13} parent=0 // pred_region
    _
  $region17: #{sbert_forward.13} parent=0 // pred_fallthru
    _
  // Predicated region
  $region18: #{sbert_forward.13} parent=0 // pred_check
    _
  $region19: #{sbert_forward.13} parent=0 // pred_check_branch
    %104 = sbr.rel (0) target = $region21
  $region20: #{sbert_forward.13} parent=0 // pred_region
    _
  $region21: #{sbert_forward.13} parent=0 // pred_fallthru
    _

// kernel: sbert_forward.14
$region0: #{sbert_forward.14}
  #allocation0 [shape = 'u32[]', space=smem, size = 0x4, offset = 0x4, fixed_abs, tag = 'smem constant byte address 0x4 - core index']
  #allocation1 [shape = 'u32[144,128]{1,0:T(1,128)}', space=vmem, size = 0x12000, scoped, tag = 'internal scratch']
  %s0 = inlined_call_operand.vmem [shape: bf16[2,8,96], index: 0, kind: input, shape index: {}]
  %s1 = inlined_call_operand.vmem [shape: f32[2,1,8], index: 1, kind: input, shape index: {}]
  %s2 = inlined_call_operand.vmem [shape: bf16[2,8,32], index: 2, kind: output, shape index: {}]
  %s3 = sld [smem:[#allocation0]]
  $region41: #{sbert_forward.14} parent=0
    _
  %s5 = ssub.s32 1, %s3
  %s6 = scalar_select 0, %s5, %s3
  loop: start=0, step=1, limit=4
  $region2: #{sbert_forward.14} parent=0 // loop_pre_header
    _
  $region3: #{sbert_forward.14} parent=0 // loop_header
    %s8 = sphi 0, %s12
    %p9 = scmp.ge.s32.totalorder %s8, 4
    %s18 = sphi 0, %s20
    %s21 = sphi 0, %s18
    %s22 = sphi 0, %s21
    %s38 = sphi 0, %s22
    %s44 = sphi 0, %s46
    %s47 = sphi 0, %s44
    %s48 = sphi 0, %s47
    %s64 = sphi 0, %s48
    %s70 = sphi 0, %s72
    %s73 = sphi 0, %s70
    %s74 = sphi 0, %s73
    %s90 = sphi 0, %s74
  $region4: #{sbert_forward.14} parent=0 // loop_header_branch
    %11 = sbr.rel (%p9) target = $region8
  $region5: #{sbert_forward.14} parent=0 // loop_body
    %s13 = ssub.s32 %s8, 1
    %s14 = ssub.s32 %s8, 2
    %s15 = sadd.s32 %s8, 1
    %s16 = ssub.s32 %s8, %s15
    %p17 = scmp.eq.s32.totalorder %s16, 0
    %s19 = sadd.s32 %s18, 1
    %s20 = scalar_select %p17, %s18, %s19
    %p23 = pneg %p17
    %p24 = scmp.eq.s32.totalorder %s8, 1
    %p25 = por %p23, %p24
    %p26 = scmp.ne.s32.totalorder %s18, %s21
    %p27 = scmp.eq.s32.totalorder %s8, 0
    %p28 = por %p26, %p27
    %p29 = scmp.ne.s32.totalorder %s18, %s21
    %p30 = scmp.eq.s32.totalorder %s13, 1
    %p31 = por %p29, %p30
    %p32 = scmp.ne.s32.totalorder %s21, %s22
    %p33 = scmp.eq.s32.totalorder %s13, 0
    %p34 = por %p32, %p33
    %p35 = scmp.ne.s32.totalorder %s21, %s22
    %p36 = scmp.eq.s32.totalorder %s14, 1
    %p37 = por %p35, %p36
    %p39 = scmp.ne.s32.totalorder %s22, %s38
    %p40 = scmp.eq.s32.totalorder %s14, 0
    %p41 = por %p39, %p40
    %s42 = ssub.s32 %s8, %s15
    %p43 = scmp.eq.s32.totalorder %s42, 0
    %s45 = sadd.s32 %s44, 1
    %s46 = scalar_select %p43, %s44, %s45
    %p49 = pneg %p43
    %p50 = scmp.eq.s32.totalorder %s8, 1
    %p51 = por %p49, %p50
    %p52 = scmp.ne.s32.totalorder %s44, %s47
    %p53 = scmp.eq.s32.totalorder %s8, 0
    %p54 = por %p52, %p53
    %p55 = scmp.ne.s32.totalorder %s44, %s47
    %p56 = scmp.eq.s32.totalorder %s13, 1
    %p57 = por %p55, %p56
    %p58 = scmp.ne.s32.totalorder %s47, %s48
    %p59 = scmp.eq.s32.totalorder %s13, 0
    %p60 = por %p58, %p59
    %p61 = scmp.ne.s32.totalorder %s47, %s48
    %p62 = scmp.eq.s32.totalorder %s14, 1
    %p63 = por %p61, %p62
    %p65 = scmp.ne.s32.totalorder %s48, %s64
    %p66 = scmp.eq.s32.totalorder %s14, 0
    %p67 = por %p65, %p66
    %s68 = ssub.s32 %s8, %s15
    %p69 = scmp.eq.s32.totalorder %s68, 0
    %s71 = sadd.s32 %s70, 1
    %s72 = scalar_select %p69, %s70, %s71
    %p75 = pneg %p69
    %p76 = scmp.eq.s32.totalorder %s8, 1
    %p77 = por %p75, %p76
    %p78 = scmp.ne.s32.totalorder %s70, %s73
    %p79 = scmp.eq.s32.totalorder %s8, 0
    %p80 = por %p78, %p79
    %p81 = scmp.ne.s32.totalorder %s70, %s73
    %p82 = scmp.eq.s32.totalorder %s13, 1
    %p83 = por %p81, %p82
    %p84 = scmp.ne.s32.totalorder %s73, %s74
    %p85 = scmp.eq.s32.totalorder %s13, 0
    %p86 = por %p84, %p85
    %p87 = scmp.ne.s32.totalorder %s73, %s74
    %p88 = scmp.eq.s32.totalorder %s14, 1
    %p89 = por %p87, %p88
    %p91 = scmp.ne.s32.totalorder %s74, %s90
    %p92 = scmp.eq.s32.totalorder %s14, 0
    %p93 = por %p91, %p92
    %p94 = scmp.le.s32.totalorder 1, %s8
    %p95 = scmp.lt.s32.totalorder %s8, 3
    %p96 = pnand %p94, %p95
    %p97 = pneg %p96
    // Predicated region
    $region9: #{sbert_forward.14} parent=5 // pred_check
      _
    $region10: #{sbert_forward.14} parent=5 // pred_check_branch
      %99 = sbr.rel (%p96) target = $region12
    $region11: #{sbert_forward.14} parent=5 // pred_region
      %s100 = ssub.s32 %s8, 1
    $region12: #{sbert_forward.14} parent=5 // pred_fallthru
      _
    %p101 = scmp.lt.s32.totalorder %s8, 2
    // Predicated region
    $region13: #{sbert_forward.14} parent=5 // pred_check
      %p102 = pneg %p101
    $region14: #{sbert_forward.14} parent=5 // pred_check_branch
      %104 = sbr.rel (%p102) target = $region16
    $region15: #{sbert_forward.14} parent=5 // pred_region
      // Predicated region
      $region17: #{sbert_forward.14} parent=15 // pred_check
        %p105 = pneg %p28
      $region18: #{sbert_forward.14} parent=15 // pred_check_branch
        %107 = sbr.rel (%p105) target = $region20
      $region19: #{sbert_forward.14} parent=15 // pred_region
        %p108 = scmp.lt.s32.totalorder %s8, 1
        %s109 = scalar_select %p108, %s8, 1
        %s110 = smul.addr %s109, 4
        %s111 = scalar_lea.vmem %s0, %s110
      $region20: #{sbert_forward.14} parent=15 // pred_fallthru
        _
      // Predicated region
      $region21: #{sbert_forward.14} parent=15 // pred_check
        %p112 = pneg %p54
      $region22: #{sbert_forward.14} parent=15 // pred_check_branch
        %114 = sbr.rel (%p112) target = $region24
      $region23: #{sbert_forward.14} parent=15 // pred_region
        %p115 = scmp.lt.s32.totalorder %s8, 1
        %s116 = scalar_select %p115, %s8, 1
        %s117 = scalar_lea.vmem %s1, %s116
      $region24: #{sbert_forward.14} parent=15 // pred_fallthru
        _
    $region16: #{sbert_forward.14} parent=5 // pred_fallthru
      _
    %p118 = scmp.le.s32.totalorder 1, %s8
    %p119 = scmp.lt.s32.totalorder %s8, 3
    %p120 = pnand %p118, %p119
    %p121 = pneg %p120
    // Predicated region
    $region25: #{sbert_forward.14} parent=5 // pred_check
      _
    $region26: #{sbert_forward.14} parent=5 // pred_check_branch
      %123 = sbr.rel (%p120) target = $region28
    $region27: #{sbert_forward.14} parent=5 // pred_region
      %s124 = ssub.s32 %s8, 1
      %p125 = scmp.lt.s32.totalorder %s13, 1
      %s126 = scalar_select %p125, %s13, 1
      %s127 = smul.addr %s126, 4
      %s128 = scalar_lea.vmem %s0, %s127
      %p129 = pneg %p34
      %p130 = pneg %p31
      %p131 = scmp.lt.s32.totalorder %s13, 1
      %s132 = scalar_select %p131, %s13, 1
      %s133 = scalar_lea.vmem %s1, %s132
      %p134 = pneg %p60
      %p135 = pneg %p57
      %p136 = pneg %p86
      %p137 = pneg %p83
      %p138 = scmp.lt.s32.totalorder %s13, 1
      %s139 = scalar_select %p138, %s13, 1
      %s140 = smul.addr %s139, 4
      %s141 = scalar_lea.vmem %s2, %s140
      %p142 = scmp.lt.s32.totalorder %s13, 1
      %s143 = scalar_select %p142, %s13, 1
      %s144 = smul.addr %s143, 4
      %s145 = scalar_lea.vmem %s0, %s144
      %p146 = scmp.lt.s32.totalorder %s13, 1
      %s147 = scalar_select %p146, %s13, 1
      %s148 = scalar_lea.vmem %s1, %s147
      %p149 = scmp.lt.s32.totalorder %s13, 1
      %s150 = scalar_select %p149, %s13, 1
      %s151 = smul.addr %s150, 4
      %s152 = scalar_lea.vmem %s2, %s151
      %v154 = vld [vmem:[%s145] sm:$0xf]
      %v155 = vld [vmem:[%s148] sm:$0x1]
      %v156 = vsub.f32 1.0, %v155
      %v157 = vmul.f32 %v156, -1e+09
      %v159 = vunpack.c.l.b16 %v154
      %v160 = vpack.c.b16 %v159, %v159
      %161 = vrot.lane.b32.xlu0 %v160, 96
      %v162 = vpop.permute.xlu0 %161
      %vm163 = vcmask 64512
      %v165 = vsel %vm163, %v154, 0
      %v168 = vsel %vm163, %v162, 0
      %170 = vmatprep.subr.bf16.mxu0 0
      %171 = vmatpush1.bf16.xpose.msra.mxu0 0
      %172 = vmatprep.subr.bf16.mxu0 0
      %173 = vmatpush1.bf16.xpose.msra.mxu0 0
      %174 = vmatprep.subr.bf16.mxu0 0
      %175 = vmatpush1.bf16.xpose.msra.mxu0 0
      %176 = vmatprep.subr.bf16.mxu0 0
      %177 = vmatpush1.bf16.xpose.msra.mxu0 0
      %178 = vmatprep.subr.bf16.mxu0 0
      %179 = vmatpush1.bf16.xpose.msra.mxu0 0
      %180 = vmatprep.subr.bf16.mxu0 0
      %181 = vmatpush1.bf16.xpose.msra.mxu0 0
      %182 = vmatprep.subr.bf16.mxu0 0
      %183 = vmatpush1.bf16.xpose.msra.mxu0 0
      %184 = vmatprep.subr.bf16.mxu0 0
      %185 = vmatpush1.bf16.xpose.msra.mxu0 %v168
      %186 = vmatprep.subr.bf16.mxu0 0
      %187 = vmatpush2.bf16.xpose.msra.mxu0 0
      %188 = vmatprep.subr.bf16.mxu0 0
      %189 = vmatpush2.bf16.xpose.msra.mxu0 0
      %190 = vmatprep.subr.bf16.mxu0 0
      %191 = vmatpush2.bf16.xpose.msra.mxu0 0
      %192 = vmatprep.subr.bf16.mxu0 0
      %193 = vmatpush2.bf16.xpose.msra.mxu0 0
      %194 = vmatprep.subr.bf16.mxu0 0
      %195 = vmatpush2.bf16.xpose.msra.mxu0 0
      %196 = vmatprep.subr.bf16.mxu0 0
      %197 = vmatpush2.bf16.xpose.msra.mxu0 0
      %198 = vmatprep.subr.bf16.mxu0 0
      %199 = vmatpush2.bf16.xpose.msra.mxu0 0
      %200 = vmatprep.subr.bf16.mxu0 0
      %201 = vmatpush2.bf16.xpose.msra.mxu0 0
      %202 = vmatprep.mubr.bf16.mxu0 0
      %203 = vmatmul.mubr.bf16.gmra.mxu0 %v165
      %v204 = vpop.f32.mrf.mxu0
      %v205 = vadd.f32 0.0, %v204
      %v206 = vpop.f32.mrf.mxu0
      %v207 = vpop.f32.mrf.mxu0
      %v208 = vpop.f32.mrf.mxu0
      %209 = vdwg.mxu0
      %v210 = vmul.f32 %v205, 0.35355338
      %v212 = vlaneseq
      %v213 = vshrl.u32 %v212, 7
      %v214 = vsub.s32 0, %v213
      %v215 = vrot.slane %v157, %v214
      %v217 = vadd.f32 %v210, %v215
      %v218 = vsel %vm163, %v217, -inf
      %219 = vmax.xlane.f32.xlu0 %v218
      %v220 = vpop.xlane.xlu0 %219
      %v221 = vsub.f32 %v217, %v220
      %v222 = vmul.f32 %v221, 1.442695
      %v223 = vpow.pop %v222
      %v224 = vsel %vm163, %v223, 0.0
      %225 = vadd.xlane.f32.xlu0 %v224
      %v226 = vpop.xlane.xlu0 %225
      %v227 = vrcp.pop %v226
      %v228 = vmul.f32 %v223, %v227
      %v229 = vpack.c.bf16 %v228, %v228
      %230 = vrot.lane.b32.xlu0 %v160, 64
      %v231 = vpop.permute.xlu0 %230
      %v233 = vsel %vm163, %v229, 0
      %vm235 = vcmask 1043456
      %v237 = vsel %vm235, %v231, 0
      %239 = vmatprep.subr.bf16.mxu0 0
      %240 = vmatpush1.bf16.msra.mxu0 0
      %241 = vmatprep.subr.bf16.mxu0 0
      %242 = vmatpush1.bf16.msra.mxu0 0
      %243 = vmatprep.subr.bf16.mxu0 0
      %244 = vmatpush1.bf16.msra.mxu0 0
      %245 = vmatprep.subr.bf16.mxu0 0
      %246 = vmatpush1.bf16.msra.mxu0 0
      %247 = vmatprep.subr.bf16.mxu0 0
      %248 = vmatpush1.bf16.msra.mxu0 0
      %249 = vmatprep.subr.bf16.mxu0 0
      %250 = vmatpush1.bf16.msra.mxu0 0
      %251 = vmatprep.subr.bf16.mxu0 0
      %252 = vmatpush1.bf16.msra.mxu0 0
      %253 = vmatprep.subr.bf16.mxu0 0
      %254 = vmatpush1.bf16.msra.mxu0 %v237
      %255 = vmatprep.subr.bf16.mxu0 0
      %256 = vmatpush2.bf16.msra.mxu0 0
      %257 = vmatprep.subr.bf16.mxu0 0
      %258 = vmatpush2.bf16.msra.mxu0 0
      %259 = vmatprep.subr.bf16.mxu0 0
      %260 = vmatpush2.bf16.msra.mxu0 0
      %261 = vmatprep.subr.bf16.mxu0 0
      %262 = vmatpush2.bf16.msra.mxu0 0
      %263 = vmatprep.subr.bf16.mxu0 0
      %264 = vmatpush2.bf16.msra.mxu0 0
      %265 = vmatprep.subr.bf16.mxu0 0
      %266 = vmatpush2.bf16.msra.mxu0 0
      %267 = vmatprep.subr.bf16.mxu0 0
      %268 = vmatpush2.bf16.msra.mxu0 0
      %269 = vmatprep.subr.bf16.mxu0 0
      %270 = vmatpush2.bf16.msra.mxu0 0
      %271 = vmatprep.mubr.bf16.mxu0 0
      %272 = vmatmul.mubr.bf16.gmra.mxu0 %v233
      %v273 = vpop.f32.mrf.mxu0
      %v274 = vadd.f32 0.0, %v273
      %v275 = vpop.f32.mrf.mxu0
      %v276 = vpop.f32.mrf.mxu0
      %v277 = vpop.f32.mrf.mxu0
      %278 = vdwg.mxu0
      %279 = vrot.lane.b32.xlu0 %v160, 120
      %v280 = vpop.permute.xlu0 %279
      %281 = vrot.lane.b32.xlu0 %v160, 88
      %v282 = vpop.permute.xlu0 %281
      %v284 = vsel %vm163, %v280, 0
      %v287 = vsel %vm163, %v282, 0
      %289 = vmatprep.subr.bf16.mxu0 0
      %290 = vmatpush1.bf16.xpose.msra.mxu0 0
      %291 = vmatprep.subr.bf16.mxu0 0
      %292 = vmatpush1.bf16.xpose.msra.mxu0 0
      %293 = vmatprep.subr.bf16.mxu0 0
      %294 = vmatpush1.bf16.xpose.msra.mxu0 0
      %295 = vmatprep.subr.bf16.mxu0 0
      %296 = vmatpush1.bf16.xpose.msra.mxu0 0
      %297 = vmatprep.subr.bf16.mxu0 0
      %298 = vmatpush1.bf16.xpose.msra.mxu0 0
      %299 = vmatprep.subr.bf16.mxu0 0
      %300 = vmatpush1.bf16.xpose.msra.mxu0 0
      %301 = vmatprep.subr.bf16.mxu0 0
      %302 = vmatpush1.bf16.xpose.msra.mxu0 0
      %303 = vmatprep.subr.bf16.mxu0 0
      %304 = vmatpush1.bf16.xpose.msra.mxu0 %v287
      %305 = vmatprep.subr.bf16.mxu0 0
      %306 = vmatpush2.bf16.xpose.msra.mxu0 0
      %307 = vmatprep.subr.bf16.mxu0 0
      %308 = vmatpush2.bf16.xpose.msra.mxu0 0
      %309 = vmatprep.subr.bf16.mxu0 0
      %310 = vmatpush2.bf16.xpose.msra.mxu0 0
      %311 = vmatprep.subr.bf16.mxu0 0
      %312 = vmatpush2.bf16.xpose.msra.mxu0 0
      %313 = vmatprep.subr.bf16.mxu0 0
      %314 = vmatpush2.bf16.xpose.msra.mxu0 0
      %315 = vmatprep.subr.bf16.mxu0 0
      %316 = vmatpush2.bf16.xpose.msra.mxu0 0
      %317 = vmatprep.subr.bf16.mxu0 0
      %318 = vmatpush2.bf16.xpose.msra.mxu0 0
      %319 = vmatprep.subr.bf16.mxu0 0
      %320 = vmatpush2.bf16.xpose.msra.mxu0 0
      %321 = vmatprep.mubr.bf16.mxu0 0
      %322 = vmatmul.mubr.bf16.gmra.mxu0 %v284
      %v323 = vpop.f32.mrf.mxu0
      %v324 = vadd.f32 0.0, %v323
      %v325 = vpop.f32.mrf.mxu0
      %v326 = vpop.f32.mrf.mxu0
      %v327 = vpop.f32.mrf.mxu0
      %328 = vdwg.mxu0
      %v329 = vmul.f32 %v324, 0.35355338
      %v330 = vadd.f32 %v329, %v215
      %v331 = vsel %vm163, %v330, -inf
      %332 = vmax.xlane.f32.xlu0 %v331
      %v333 = vpop.xlane.xlu0 %332
      %v334 = vsub.f32 %v330, %v333
      %v335 = vmul.f32 %v334, 1.442695
      %v336 = vpow.pop %v335
      %v337 = vsel %vm163, %v336, 0.0
      %338 = vadd.xlane.f32.xlu0 %v337
      %v339 = vpop.xlane.xlu0 %338
      %v340 = vrcp.pop %v339
      %v341 = vmul.f32 %v336, %v340
      %v342 = vpack.c.bf16 %v341, %v341
      %343 = vrot.lane.b32.xlu0 %v160, 56
      %v344 = vpop.permute.xlu0 %343
      %v346 = vsel %vm163, %v342, 0
      %v349 = vsel %vm235, %v344, 0
      %351 = vmatprep.subr.bf16.mxu0 0
      %352 = vmatpush1.bf16.msra.mxu0 0
      %353 = vmatprep.subr.bf16.mxu0 0
      %354 = vmatpush1.bf16.msra.mxu0 0
      %355 = vmatprep.subr.bf16.mxu0 0
      %356 = vmatpush1.bf16.msra.mxu0 0
      %357 = vmatprep.subr.bf16.mxu0 0
      %358 = vmatpush1.bf16.msra.mxu0 0
      %359 = vmatprep.subr.bf16.mxu0 0
      %360 = vmatpush1.bf16.msra.mxu0 0
      %361 = vmatprep.subr.bf16.mxu0 0
      %362 = vmatpush1.bf16.msra.mxu0 0
      %363 = vmatprep.subr.bf16.mxu0 0
      %364 = vmatpush1.bf16.msra.mxu0 0
      %365 = vmatprep.subr.bf16.mxu0 0
      %366 = vmatpush1.bf16.msra.mxu0 %v349
      %367 = vmatprep.subr.bf16.mxu0 0
      %368 = vmatpush2.bf16.msra.mxu0 0
      %369 = vmatprep.subr.bf16.mxu0 0
      %370 = vmatpush2.bf16.msra.mxu0 0
      %371 = vmatprep.subr.bf16.mxu0 0
      %372 = vmatpush2.bf16.msra.mxu0 0
      %373 = vmatprep.subr.bf16.mxu0 0
      %374 = vmatpush2.bf16.msra.mxu0 0
      %375 = vmatprep.subr.bf16.mxu0 0
      %376 = vmatpush2.bf16.msra.mxu0 0
      %377 = vmatprep.subr.bf16.mxu0 0
      %378 = vmatpush2.bf16.msra.mxu0 0
      %379 = vmatprep.subr.bf16.mxu0 0
      %380 = vmatpush2.bf16.msra.mxu0 0
      %381 = vmatprep.subr.bf16.mxu0 0
      %382 = vmatpush2.bf16.msra.mxu0 0
      %383 = vmatprep.mubr.bf16.mxu0 0
      %384 = vmatmul.mubr.bf16.gmra.mxu0 %v346
      %v385 = vpop.f32.mrf.mxu0
      %v386 = vadd.f32 0.0, %v385
      %v387 = vpop.f32.mrf.mxu0
      %v388 = vpop.f32.mrf.mxu0
      %v389 = vpop.f32.mrf.mxu0
      %390 = vdwg.mxu0
      %391 = vrot.lane.b32.xlu0 %v160, 112
      %v392 = vpop.permute.xlu0 %391
      %393 = vrot.lane.b32.xlu0 %v160, 80
      %v394 = vpop.permute.xlu0 %393
      %v396 = vsel %vm163, %v392, 0
      %v399 = vsel %vm163, %v394, 0
      %401 = vmatprep.subr.bf16.mxu0 0
      %402 = vmatpush1.bf16.xpose.msra.mxu0 0
      %403 = vmatprep.subr.bf16.mxu0 0
      %404 = vmatpush1.bf16.xpose.msra.mxu0 0
      %405 = vmatprep.subr.bf16.mxu0 0
      %406 = vmatpush1.bf16.xpose.msra.mxu0 0
      %407 = vmatprep.subr.bf16.mxu0 0
      %408 = vmatpush1.bf16.xpose.msra.mxu0 0
      %409 = vmatprep.subr.bf16.mxu0 0
      %410 = vmatpush1.bf16.xpose.msra.mxu0 0
      %411 = vmatprep.subr.bf16.mxu0 0
      %412 = vmatpush1.bf16.xpose.msra.mxu0 0
      %413 = vmatprep.subr.bf16.mxu0 0
      %414 = vmatpush1.bf16.xpose.msra.mxu0 0
      %415 = vmatprep.subr.bf16.mxu0 0
      %416 = vmatpush1.bf16.xpose.msra.mxu0 %v399
      %417 = vmatprep.subr.bf16.mxu0 0
      %418 = vmatpush2.bf16.xpose.msra.mxu0 0
      %419 = vmatprep.subr.bf16.mxu0 0
      %420 = vmatpush2.bf16.xpose.msra.mxu0 0
      %421 = vmatprep.subr.bf16.mxu0 0
      %422 = vmatpush2.bf16.xpose.msra.mxu0 0
      %423 = vmatprep.subr.bf16.mxu0 0
      %424 = vmatpush2.bf16.xpose.msra.mxu0 0
      %425 = vmatprep.subr.bf16.mxu0 0
      %426 = vmatpush2.bf16.xpose.msra.mxu0 0
      %427 = vmatprep.subr.bf16.mxu0 0
      %428 = vmatpush2.bf16.xpose.msra.mxu0 0
      %429 = vmatprep.subr.bf16.mxu0 0
      %430 = vmatpush2.bf16.xpose.msra.mxu0 0
      %431 = vmatprep.subr.bf16.mxu0 0
      %432 = vmatpush2.bf16.xpose.msra.mxu0 0
      %433 = vmatprep.mubr.bf16.mxu0 0
      %434 = vmatmul.mubr.bf16.gmra.mxu0 %v396
      %v435 = vpop.f32.mrf.mxu0
      %v436 = vadd.f32 0.0, %v435
      %v437 = vpop.f32.mrf.mxu0
      %v438 = vpop.f32.mrf.mxu0
      %v439 = vpop.f32.mrf.mxu0
      %440 = vdwg.mxu0
      %v441 = vmul.f32 %v436, 0.35355338
      %v442 = vadd.f32 %v441, %v215
      %v443 = vsel %vm163, %v442, -inf
      %444 = vmax.xlane.f32.xlu0 %v443
      %v445 = vpop.xlane.xlu0 %444
      %v446 = vsub.f32 %v442, %v445
      %v447 = vmul.f32 %v446, 1.442695
      %v448 = vpow.pop %v447
      %v449 = vsel %vm163, %v448, 0.0
      %450 = vadd.xlane.f32.xlu0 %v449
      %v451 = vpop.xlane.xlu0 %450
      %v452 = vrcp.pop %v451
      %v453 = vmul.f32 %v448, %v452
      %v454 = vpack.c.bf16 %v453, %v453
      %455 = vrot.lane.b32.xlu0 %v160, 48
      %v456 = vpop.permute.xlu0 %455
      %v458 = vsel %vm163, %v454, 0
      %v461 = vsel %vm235, %v456, 0
      %463 = vmatprep.subr.bf16.mxu0 0
      %464 = vmatpush1.bf16.msra.mxu0 0
      %465 = vmatprep.subr.bf16.mxu0 0
      %466 = vmatpush1.bf16.msra.mxu0 0
      %467 = vmatprep.subr.bf16.mxu0 0
      %468 = vmatpush1.bf16.msra.mxu0 0
      %469 = vmatprep.subr.bf16.mxu0 0
      %470 = vmatpush1.bf16.msra.mxu0 0
      %471 = vmatprep.subr.bf16.mxu0 0
      %472 = vmatpush1.bf16.msra.mxu0 0
      %473 = vmatprep.subr.bf16.mxu0 0
      %474 = vmatpush1.bf16.msra.mxu0 0
      %475 = vmatprep.subr.bf16.mxu0 0
      %476 = vmatpush1.bf16.msra.mxu0 0
      %477 = vmatprep.subr.bf16.mxu0 0
      %478 = vmatpush1.bf16.msra.mxu0 %v461
      %479 = vmatprep.subr.bf16.mxu0 0
      %480 = vmatpush2.bf16.msra.mxu0 0
      %481 = vmatprep.subr.bf16.mxu0 0
      %482 = vmatpush2.bf16.msra.mxu0 0
      %483 = vmatprep.subr.bf16.mxu0 0
      %484 = vmatpush2.bf16.msra.mxu0 0
      %485 = vmatprep.subr.bf16.mxu0 0
      %486 = vmatpush2.bf16.msra.mxu0 0
      %487 = vmatprep.subr.bf16.mxu0 0
      %488 = vmatpush2.bf16.msra.mxu0 0
      %489 = vmatprep.subr.bf16.mxu0 0
      %490 = vmatpush2.bf16.msra.mxu0 0
      %491 = vmatprep.subr.bf16.mxu0 0
      %492 = vmatpush2.bf16.msra.mxu0 0
      %493 = vmatprep.subr.bf16.mxu0 0
      %494 = vmatpush2.bf16.msra.mxu0 0
      %495 = vmatprep.mubr.bf16.mxu0 0
      %496 = vmatmul.mubr.bf16.gmra.mxu0 %v458
      %v497 = vpop.f32.mrf.mxu0
      %v498 = vadd.f32 0.0, %v497
      %v499 = vpop.f32.mrf.mxu0
      %v500 = vpop.f32.mrf.mxu0
      %v501 = vpop.f32.mrf.mxu0
      %502 = vdwg.mxu0
      %503 = vrot.lane.b32.xlu0 %v160, 104
      %v504 = vpop.permute.xlu0 %503
      %505 = vrot.lane.b32.xlu0 %v160, 72
      %v506 = vpop.permute.xlu0 %505
      %v508 = vsel %vm163, %v504, 0
      %v511 = vsel %vm163, %v506, 0
      %513 = vmatprep.subr.bf16.mxu0 0
      %514 = vmatpush1.bf16.xpose.msra.mxu0 0
      %515 = vmatprep.subr.bf16.mxu0 0
      %516 = vmatpush1.bf16.xpose.msra.mxu0 0
      %517 = vmatprep.subr.bf16.mxu0 0
      %518 = vmatpush1.bf16.xpose.msra.mxu0 0
      %519 = vmatprep.subr.bf16.mxu0 0
      %520 = vmatpush1.bf16.xpose.msra.mxu0 0
      %521 = vmatprep.subr.bf16.mxu0 0
      %522 = vmatpush1.bf16.xpose.msra.mxu0 0
      %523 = vmatprep.subr.bf16.mxu0 0
      %524 = vmatpush1.bf16.xpose.msra.mxu0 0
      %525 = vmatprep.subr.bf16.mxu0 0
      %526 = vmatpush1.bf16.xpose.msra.mxu0 0
      %527 = vmatprep.subr.bf16.mxu0 0
      %528 = vmatpush1.bf16.xpose.msra.mxu0 %v511
      %529 = vmatprep.subr.bf16.mxu0 0
      %530 = vmatpush2.bf16.xpose.msra.mxu0 0
      %531 = vmatprep.subr.bf16.mxu0 0
      %532 = vmatpush2.bf16.xpose.msra.mxu0 0
      %533 = vmatprep.subr.bf16.mxu0 0
      %534 = vmatpush2.bf16.xpose.msra.mxu0 0
      %535 = vmatprep.subr.bf16.mxu0 0
      %536 = vmatpush2.bf16.xpose.msra.mxu0 0
      %537 = vmatprep.subr.bf16.mxu0 0
      %538 = vmatpush2.bf16.xpose.msra.mxu0 0
      %539 = vmatprep.subr.bf16.mxu0 0
      %540 = vmatpush2.bf16.xpose.msra.mxu0 0
      %541 = vmatprep.subr.bf16.mxu0 0
      %542 = vmatpush2.bf16.xpose.msra.mxu0 0
      %543 = vmatprep.subr.bf16.mxu0 0
      %544 = vmatpush2.bf16.xpose.msra.mxu0 0
      %545 = vmatprep.mubr.bf16.mxu0 0
      %546 = vmatmul.mubr.bf16.gmra.mxu0 %v508
      %v547 = vpop.f32.mrf.mxu0
      %v548 = vadd.f32 0.0, %v547
      %v549 = vpop.f32.mrf.mxu0
      %v550 = vpop.f32.mrf.mxu0
      %v551 = vpop.f32.mrf.mxu0
      %552 = vdwg.mxu0
      %v553 = vmul.f32 %v548, 0.35355338
      %v554 = vadd.f32 %v553, %v215
      %v555 = vsel %vm163, %v554, -inf
      %556 = vmax.xlane.f32.xlu0 %v555
      %v557 = vpop.xlane.xlu0 %556
      %v558 = vsub.f32 %v554, %v557
      %v559 = vmul.f32 %v558, 1.442695
      %v560 = vpow.pop %v559
      %v561 = vsel %vm163, %v560, 0.0
      %562 = vadd.xlane.f32.xlu0 %v561
      %v563 = vpop.xlane.xlu0 %562
      %v564 = vrcp.pop %v563
      %v565 = vmul.f32 %v560, %v564
      %v566 = vpack.c.bf16 %v565, %v565
      %567 = vrot.lane.b32.xlu0 %v160, 40
      %v568 = vpop.permute.xlu0 %567
      %v570 = vsel %vm163, %v566, 0
      %v573 = vsel %vm235, %v568, 0
      %575 = vmatprep.subr.bf16.mxu0 0
      %576 = vmatpush1.bf16.msra.mxu0 0
      %577 = vmatprep.subr.bf16.mxu0 0
      %578 = vmatpush1.bf16.msra.mxu0 0
      %579 = vmatprep.subr.bf16.mxu0 0
      %580 = vmatpush1.bf16.msra.mxu0 0
      %581 = vmatprep.subr.bf16.mxu0 0
      %582 = vmatpush1.bf16.msra.mxu0 0
      %583 = vmatprep.subr.bf16.mxu0 0
      %584 = vmatpush1.bf16.msra.mxu0 0
      %585 = vmatprep.subr.bf16.mxu0 0
      %586 = vmatpush1.bf16.msra.mxu0 0
      %587 = vmatprep.subr.bf16.mxu0 0
      %588 = vmatpush1.bf16.msra.mxu0 0
      %589 = vmatprep.subr.bf16.mxu0 0
      %590 = vmatpush1.bf16.msra.mxu0 %v573
      %591 = vmatprep.subr.bf16.mxu0 0
      %592 = vmatpush2.bf16.msra.mxu0 0
      %593 = vmatprep.subr.bf16.mxu0 0
      %594 = vmatpush2.bf16.msra.mxu0 0
      %595 = vmatprep.subr.bf16.mxu0 0
      %596 = vmatpush2.bf16.msra.mxu0 0
      %597 = vmatprep.subr.bf16.mxu0 0
      %598 = vmatpush2.bf16.msra.mxu0 0
      %599 = vmatprep.subr.bf16.mxu0 0
      %600 = vmatpush2.bf16.msra.mxu0 0
      %601 = vmatprep.subr.bf16.mxu0 0
      %602 = vmatpush2.bf16.msra.mxu0 0
      %603 = vmatprep.subr.bf16.mxu0 0
      %604 = vmatpush2.bf16.msra.mxu0 0
      %605 = vmatprep.subr.bf16.mxu0 0
      %606 = vmatpush2.bf16.msra.mxu0 0
      %607 = vmatprep.mubr.bf16.mxu0 0
      %608 = vmatmul.mubr.bf16.gmra.mxu0 %v570
      %v609 = vpop.f32.mrf.mxu0
      %v610 = vadd.f32 0.0, %v609
      %v611 = vpop.f32.mrf.mxu0
      %v612 = vpop.f32.mrf.mxu0
      %v613 = vpop.f32.mrf.mxu0
      %614 = vdwg.mxu0
      %616 = vrot.lane.b32.xlu0 %v386, 8
      %v617 = vpop.permute.xlu0 %616
      %620 = vrot.lane.b32.xlu0 %v498, 16
      %v621 = vpop.permute.xlu0 %620
      %624 = vrot.lane.b32.xlu0 %v610, 24
      %v625 = vpop.permute.xlu0 %624
      %v627 = vsel %vm163, %v274, %v617
      %vm628 = vcmask 130048
      %v629 = vsel %vm628, %v627, %v621
      %vm630 = vcmask 195584
      %v631 = vsel %vm630, %v629, %v625
      %v632 = vpack.c.bf16 %v631, %v631
      %vm633 = vcmask 257024
      %634 = vst.msk [vmem:[%s152] sm:$0xf] %vm633, %v632
      %p635 = scmp.lt.s32.totalorder %s13, 1
      %s636 = scalar_select %p635, %s13, 1
      %s637 = smul.addr %s636, 4
      %s638 = scalar_lea.vmem %s2, %s637
      // Predicated region
      $region29: #{sbert_forward.14} parent=27 // pred_check
        %p639 = pneg %p83
      $region30: #{sbert_forward.14} parent=27 // pred_check_branch
        %641 = sbr.rel (%p639) target = $region32
      $region31: #{sbert_forward.14} parent=27 // pred_region
        _
      $region32: #{sbert_forward.14} parent=27 // pred_fallthru
        _
    $region28: #{sbert_forward.14} parent=5 // pred_fallthru
      _
    %p642 = scmp.le.s32.totalorder 2, %s8
    // Predicated region
    $region33: #{sbert_forward.14} parent=5 // pred_check
      %p643 = pneg %p642
    $region34: #{sbert_forward.14} parent=5 // pred_check_branch
      %645 = sbr.rel (%p643) target = $region36
    $region35: #{sbert_forward.14} parent=5 // pred_region
      %s646 = ssub.s32 %s8, 2
      // Predicated region
      $region37: #{sbert_forward.14} parent=35 // pred_check
        %p647 = pneg %p89
      $region38: #{sbert_forward.14} parent=35 // pred_check_branch
        %649 = sbr.rel (%p647) target = $region40
      $region39: #{sbert_forward.14} parent=35 // pred_region
        %p650 = scmp.lt.s32.totalorder %s14, 1
        %s651 = scalar_select %p650, %s14, 1
        %s652 = smul.addr %s651, 4
        %s653 = scalar_lea.vmem %s2, %s652
      $region40: #{sbert_forward.14} parent=35 // pred_fallthru
        _
    $region36: #{sbert_forward.14} parent=5 // pred_fallthru
      _
  $region6: #{sbert_forward.14} parent=0 // loop_footer
    %s12 = sadd.s32 1, %s8
  $region7: #{sbert_forward.14} parent=0 // loop_footer_branch
    %7 = sbr.rel target = $region3
  $region8: #{sbert_forward.14} parent=0 // loop_exit
    _

// kernel: sbert_forward.23
$region0: #{sbert_forward.23}
  #allocation0 [shape = 'u32[]', space=smem, size = 0x4, offset = 0x4, fixed_abs, tag = 'smem constant byte address 0x4 - core index']
  #allocation1 [shape = 'u32[144,128]{1,0:T(1,128)}', space=vmem, size = 0x12000, scoped, tag = 'internal scratch']
  %s0 = inlined_call_operand.vmem [shape: bf16[2,8,32], index: 0, kind: input, shape index: {}]
  %s1 = inlined_call_operand.vmem [shape: f32[2,1,8], index: 1, kind: input, shape index: {}]
  %s2 = inlined_call_operand.hbm [shape: f32[2,1,32], index: 2, kind: output, shape index: {}]
  %s3 = sld [smem:[#allocation0]]
  $region41: #{sbert_forward.23} parent=0
    _
  %s5 = ssub.s32 1, %s3
  %s6 = scalar_select 0, %s5, %s3
  $region1: #{sbert_forward.23} parent=0
    #allocation2 [shape = 'u8[1024]{0}', space=vmem, size = 0x400, scoped, tag = 'output window, operand 0']
    #allocation3 [shape = 's32[2]{0}', space=sflag, size = 0x8, scoped, tag = 'scoped memory for sbert_forward.23']
    %7 = vsyncpa [#allocation3], 0
    %s8 = scalar_lea.sflag [#allocation3], 1
    %9 = vsyncpa %s8, 0
    loop: start=0, step=1, limit=4
    $region2: #{sbert_forward.23} parent=1 // loop_pre_header
      _
    $region3: #{sbert_forward.23} parent=1 // loop_header
      %s11 = sphi 0, %s15
      %p12 = scmp.ge.s32.totalorder %s11, 4
      %s21 = sphi 0, %s23
      %s24 = sphi 0, %s21
      %s25 = sphi 0, %s24
      %s41 = sphi 0, %s25
      %s47 = sphi 0, %s49
      %s50 = sphi 0, %s47
      %s51 = sphi 0, %s50
      %s67 = sphi 0, %s51
      %s73 = sphi 0, %s75
      %s76 = sphi 0, %s73
      %s77 = sphi 0, %s76
      %s93 = sphi 0, %s77
    $region4: #{sbert_forward.23} parent=1 // loop_header_branch
      %14 = sbr.rel (%p12) target = $region8
    $region5: #{sbert_forward.23} parent=1 // loop_body
      %s16 = ssub.s32 %s11, 1
      %s17 = ssub.s32 %s11, 2
      %s18 = sadd.s32 %s11, 1
      %s19 = ssub.s32 %s11, %s18
      %p20 = scmp.eq.s32.totalorder %s19, 0
      %s22 = sadd.s32 %s21, 1
      %s23 = scalar_select %p20, %s21, %s22
      %p26 = pneg %p20
      %p27 = scmp.eq.s32.totalorder %s11, 1
      %p28 = por %p26, %p27
      %p29 = scmp.ne.s32.totalorder %s21, %s24
      %p30 = scmp.eq.s32.totalorder %s11, 0
      %p31 = por %p29, %p30
      %p32 = scmp.ne.s32.totalorder %s21, %s24
      %p33 = scmp.eq.s32.totalorder %s16, 1
      %p34 = por %p32, %p33
      %p35 = scmp.ne.s32.totalorder %s24, %s25
      %p36 = scmp.eq.s32.totalorder %s16, 0
      %p37 = por %p35, %p36
      %p38 = scmp.ne.s32.totalorder %s24, %s25
      %p39 = scmp.eq.s32.totalorder %s17, 1
      %p40 = por %p38, %p39
      %p42 = scmp.ne.s32.totalorder %s25, %s41
      %p43 = scmp.eq.s32.totalorder %s17, 0
      %p44 = por %p42, %p43
      %s45 = ssub.s32 %s11, %s18
      %p46 = scmp.eq.s32.totalorder %s45, 0
      %s48 = sadd.s32 %s47, 1
      %s49 = scalar_select %p46, %s47, %s48
      %p52 = pneg %p46
      %p53 = scmp.eq.s32.totalorder %s11, 1
      %p54 = por %p52, %p53
      %p55 = scmp.ne.s32.totalorder %s47, %s50
      %p56 = scmp.eq.s32.totalorder %s11, 0
      %p57 = por %p55, %p56
      %p58 = scmp.ne.s32.totalorder %s47, %s50
      %p59 = scmp.eq.s32.totalorder %s16, 1
      %p60 = por %p58, %p59
      %p61 = scmp.ne.s32.totalorder %s50, %s51
      %p62 = scmp.eq.s32.totalorder %s16, 0
      %p63 = por %p61, %p62
      %p64 = scmp.ne.s32.totalorder %s50, %s51
      %p65 = scmp.eq.s32.totalorder %s17, 1
      %p66 = por %p64, %p65
      %p68 = scmp.ne.s32.totalorder %s51, %s67
      %p69 = scmp.eq.s32.totalorder %s17, 0
      %p70 = por %p68, %p69
      %s71 = ssub.s32 %s11, %s18
      %p72 = scmp.eq.s32.totalorder %s71, 0
      %s74 = sadd.s32 %s73, 1
      %s75 = scalar_select %p72, %s73, %s74
      %p78 = pneg %p72
      %p79 = scmp.eq.s32.totalorder %s11, 1
      %p80 = por %p78, %p79
      %p81 = scmp.ne.s32.totalorder %s73, %s76
      %p82 = scmp.eq.s32.totalorder %s11, 0
      %p83 = por %p81, %p82
      %p84 = scmp.ne.s32.totalorder %s73, %s76
      %p85 = scmp.eq.s32.totalorder %s16, 1
      %p86 = por %p84, %p85
      %p87 = scmp.ne.s32.totalorder %s76, %s77
      %p88 = scmp.eq.s32.totalorder %s16, 0
      %p89 = por %p87, %p88
      %p90 = scmp.ne.s32.totalorder %s76, %s77
      %p91 = scmp.eq.s32.totalorder %s17, 1
      %p92 = por %p90, %p91
      %p94 = scmp.ne.s32.totalorder %s77, %s93
      %p95 = scmp.eq.s32.totalorder %s17, 0
      %p96 = por %p94, %p95
      %p97 = scmp.le.s32.totalorder 1, %s11
      %p98 = scmp.lt.s32.totalorder %s11, 3
      %p99 = pnand %p97, %p98
      %p100 = pneg %p99
      // Predicated region
      $region9: #{sbert_forward.23} parent=5 // pred_check
        _
      $region10: #{sbert_forward.23} parent=5 // pred_check_branch
        %102 = sbr.rel (%p99) target = $region12
      $region11: #{sbert_forward.23} parent=5 // pred_region
        %s103 = ssub.s32 %s11, 1
      $region12: #{sbert_forward.23} parent=5 // pred_fallthru
        _
      %p104 = scmp.lt.s32.totalorder %s11, 2
      // Predicated region
      $region13: #{sbert_forward.23} parent=5 // pred_check
        %p105 = pneg %p104
      $region14: #{sbert_forward.23} parent=5 // pred_check_branch
        %107 = sbr.rel (%p105) target = $region16
      $region15: #{sbert_forward.23} parent=5 // pred_region
        // Predicated region
        $region17: #{sbert_forward.23} parent=15 // pred_check
          %p108 = pneg %p31
        $region18: #{sbert_forward.23} parent=15 // pred_check_branch
          %110 = sbr.rel (%p108) target = $region20
        $region19: #{sbert_forward.23} parent=15 // pred_region
          %p111 = scmp.lt.s32.totalorder %s11, 1
          %s112 = scalar_select %p111, %s11, 1
          %s113 = smul.addr %s112, 4
          %s114 = scalar_lea.vmem %s0, %s113
        $region20: #{sbert_forward.23} parent=15 // pred_fallthru
          _
        // Predicated region
        $region21: #{sbert_forward.23} parent=15 // pred_check
          %p115 = pneg %p57
        $region22: #{sbert_forward.23} parent=15 // pred_check_branch
          %117 = sbr.rel (%p115) target = $region24
        $region23: #{sbert_forward.23} parent=15 // pred_region
          %p118 = scmp.lt.s32.totalorder %s11, 1
          %s119 = scalar_select %p118, %s11, 1
          %s120 = scalar_lea.vmem %s1, %s119
        $region24: #{sbert_forward.23} parent=15 // pred_fallthru
          _
      $region16: #{sbert_forward.23} parent=5 // pred_fallthru
        _
      %p121 = scmp.le.s32.totalorder 1, %s11
      %p122 = scmp.lt.s32.totalorder %s11, 3
      %p123 = pnand %p121, %p122
      %p124 = pneg %p123
      // Predicated region
      $region25: #{sbert_forward.23} parent=5 // pred_check
        _
      $region26: #{sbert_forward.23} parent=5 // pred_check_branch
        %126 = sbr.rel (%p123) target = $region28
      $region27: #{sbert_forward.23} parent=5 // pred_region
        %s127 = ssub.s32 %s11, 1
        %p128 = scmp.lt.s32.totalorder %s16, 1
        %s129 = scalar_select %p128, %s16, 1
        %s130 = smul.addr %s129, 4
        %s131 = scalar_lea.vmem %s0, %s130
        %p132 = pneg %p37
        %p133 = pneg %p34
        %p134 = scmp.lt.s32.totalorder %s16, 1
        %s135 = scalar_select %p134, %s16, 1
        %s136 = scalar_lea.vmem %s1, %s135
        %p137 = pneg %p63
        %p138 = pneg %p60
        %p139 = pneg %p89
        %p140 = pneg %p86
        %s141 = sand.u32 %s76, 1
        %s142 = scalar_lea.sflag [#allocation3], %s141
        %s143 = sand.u32 %s76, 1
        %s144 = scalar_lea.vmem [#allocation2], %s143
        %p145 = scmp.lt.s32.totalorder %s16, 1
        %s146 = scalar_select %p145, %s16, 1
        %s147 = smul.addr %s146, 4
        %s148 = scalar_lea.vmem %s0, %s147
        %p149 = scmp.lt.s32.totalorder %s16, 1
        %s150 = scalar_select %p149, %s16, 1
        %s151 = scalar_lea.vmem %s1, %s150
        %v152 = vld [vmem:[%s148] sm:$0xf]
        %v153 = vunpack.c.l.bf16 %v152
        %v154 = vld [vmem:[%s151] sm:$0x1]
        %vm155 = vcmask 64512
        %v157 = vsel %vm155, %v154, 0
        %159 = vmatprep.subr.mxu0 0.0
        %160 = vmatpush1.msra.mxu0 0.0
        %161 = vmatprep.subr.mxu0 0.0
        %162 = vmatpush1.msra.mxu0 0.0
        %163 = vmatprep.subr.mxu0 0.0
        %164 = vmatpush1.msra.mxu0 0.0
        %165 = vmatprep.subr.mxu0 0.0
        %166 = vmatpush1.msra.mxu0 0.0
        %167 = vmatprep.subr.mxu0 0.0
        %168 = vmatpush1.msra.mxu0 0.0
        %169 = vmatprep.subr.mxu0 0.0
        %170 = vmatpush1.msra.mxu0 0.0
        %171 = vmatprep.subr.mxu0 0.0
        %172 = vmatpush1.msra.mxu0 0.0
        %173 = vmatprep.subr.mxu0 0.0
        %174 = vmatpush1.msra.mxu0 0.0
        %175 = vmatprep.subr.mxu0 0.0
        %176 = vmatpush1.msra.mxu0 0.0
        %177 = vmatprep.subr.mxu0 0.0
        %178 = vmatpush1.msra.mxu0 0.0
        %179 = vmatprep.subr.mxu0 0.0
        %180 = vmatpush1.msra.mxu0 0.0
        %181 = vmatprep.subr.mxu0 0.0
        %182 = vmatpush1.msra.mxu0 0.0
        %183 = vmatprep.subr.mxu0 0.0
        %184 = vmatpush1.msra.mxu0 0.0
        %185 = vmatprep.subr.mxu0 0.0
        %186 = vmatpush1.msra.mxu0 0.0
        %187 = vmatprep.subr.mxu0 0.0
        %188 = vmatpush1.msra.mxu0 0.0
        %189 = vmatprep.subr.mxu0 0.0
        %190 = vmatpush1.msra.mxu0 %v153
        %191 = vmatprep.subr.mxu0 0.0
        %192 = vmatpush2.msra.mxu0 0.0
        %193 = vmatprep.subr.mxu0 0.0
        %194 = vmatpush2.msra.mxu0 0.0
        %195 = vmatprep.subr.mxu0 0.0
        %196 = vmatpush2.msra.mxu0 0.0
        %197 = vmatprep.subr.mxu0 0.0
        %198 = vmatpush2.msra.mxu0 0.0
        %199 = vmatprep.subr.mxu0 0.0
        %200 = vmatpush2.msra.mxu0 0.0
        %201 = vmatprep.subr.mxu0 0.0
        %202 = vmatpush2.msra.mxu0 0.0
        %203 = vmatprep.subr.mxu0 0.0
        %204 = vmatpush2.msra.mxu0 0.0
        %205 = vmatprep.subr.mxu0 0.0
        %206 = vmatpush2.msra.mxu0 0.0
        %207 = vmatprep.subr.mxu0 0.0
        %208 = vmatpush2.msra.mxu0 0.0
        %209 = vmatprep.subr.mxu0 0.0
        %210 = vmatpush2.msra.mxu0 0.0
        %211 = vmatprep.subr.mxu0 0.0
        %212 = vmatpush2.msra.mxu0 0.0
        %213 = vmatprep.subr.mxu0 0.0
        %214 = vmatpush2.msra.mxu0 0.0
        %215 = vmatprep.subr.mxu0 0.0
        %216 = vmatpush2.msra.mxu0 0.0
        %217 = vmatprep.subr.mxu0 0.0
        %218 = vmatpush2.msra.mxu0 0.0
        %219 = vmatprep.subr.mxu0 0.0
        %220 = vmatpush2.msra.mxu0 0.0
        %221 = vmatprep.subr.mxu0 0.0
        %222 = vmatpush2.msra.mxu0 0.0
        %223 = vmatprep.mubr.f32.mxu0 0.0
        %224 = vmatmul.mubr.f32.gmra.mxu0 %v157
        %v225 = vpop.f32.mrf.mxu0
        %v226 = vadd.f32 0.0, %v225
        %v227 = vpop.f32.mrf.mxu0
        %228 = vdwg.mxu0
        %vm229 = vcmask 57344
        %v230 = vsel %vm229, %v154, 0.0
        %231 = vadd.xlane.f32.xlu0 %v230
        %v232 = vpop.xlane.xlu0 %231
        %v233 = vmax.f32 %v232, 1e-09
        %v234 = vrcp.pop %v233
        %v235 = vmul.f32 %v226, %v234
        %vm236 = vcmask 253952
        %237 = vst.msk [vmem:[%s144] sm:$0x1] %vm236, %v235
        %s238 = sand.u32 %s76, 1
        %s239 = scalar_lea.sflag [#allocation3], %s238
        %s240 = sand.u32 %s76, 1
        %s241 = scalar_lea.vmem [#allocation2], %s240
        // Predicated region
        $region29: #{sbert_forward.23} parent=27 // pred_check
          %p242 = pneg %p86
        $region30: #{sbert_forward.23} parent=27 // pred_check_branch
          %244 = sbr.rel (%p242) target = $region32
        $region31: #{sbert_forward.23} parent=27 // pred_region
          %s246 = ssub.s32 16, 16
          %247 = vsyncadd %s239, %s246
          %s248 = smul.addr %s16, 16
          %s249 = scalar_lea.hbm %s2, %s248
          %s251 = sshll.u32 %s241, 4
          %s252 = int_to_ptr.vmem [resolvable:$true] %s251
          %254 = dma.vmem_to_hbm [thread:$0]  %s252, 16, %s249, %s239
        $region32: #{sbert_forward.23} parent=27 // pred_fallthru
          _
      $region28: #{sbert_forward.23} parent=5 // pred_fallthru
        _
      %p255 = scmp.le.s32.totalorder 2, %s11
      // Predicated region
      $region33: #{sbert_forward.23} parent=5 // pred_check
        %p256 = pneg %p255
      $region34: #{sbert_forward.23} parent=5 // pred_check_branch
        %258 = sbr.rel (%p256) target = $region36
      $region35: #{sbert_forward.23} parent=5 // pred_region
        %s259 = ssub.s32 %s11, 2
        // Predicated region
        $region37: #{sbert_forward.23} parent=35 // pred_check
          %p260 = pneg %p92
        $region38: #{sbert_forward.23} parent=35 // pred_check_branch
          %262 = sbr.rel (%p260) target = $region40
        $region39: #{sbert_forward.23} parent=35 // pred_region
          %s263 = sand.u32 %s77, 1
          %s264 = scalar_lea.sflag [#allocation3], %s263
          %s265 = sand.u32 %s77, 1
          %s266 = scalar_lea.vmem [#allocation2], %s265
          %267 = dma.done %s264, 16
        $region40: #{sbert_forward.23} parent=35 // pred_fallthru
          _
      $region36: #{sbert_forward.23} parent=5 // pred_fallthru
        _
    $region6: #{sbert_forward.23} parent=1 // loop_footer
      %s15 = sadd.s32 1, %s11
    $region7: #{sbert_forward.23} parent=1 // loop_footer_branch
      %10 = sbr.rel target = $region3
    $region8: #{sbert_forward.23} parent=1 // loop_exit
      _
    %268 = vsyncpa [#allocation3], 1
    %s269 = scalar_lea.sflag [#allocation3], 1
    %270 = vsyncpa %s269, 1

// kernel: sbert_forward.16
$region0: #{sbert_forward.16}
  #allocation0 [shape = 'u32[]', space=smem, size = 0x4, offset = 0x4, fixed_abs, tag = 'smem constant byte address 0x4 - core index']
  #allocation1 [shape = 'u32[144,128]{1,0:T(1,128)}', space=vmem, size = 0x12000, scoped, tag = 'internal scratch']
  %s0 = inlined_call_operand.vmem [shape: bf16[16,32], index: 0, kind: input, shape index: {}]
  %s1 = inlined_call_operand.vmem [shape: bf16[32,64], index: 1, kind: input, shape index: {}]
  %s2 = inlined_call_operand.vmem [shape: f32[1,64], index: 2, kind: input, shape index: {}]
  %s3 = inlined_call_operand.vmem [shape: bf16[16,64], index: 3, kind: output, shape index: {}]
  %s4 = sld [smem:[#allocation0]]
  $region22: #{sbert_forward.16} parent=0
    _
  %s6 = ssub.s32 1, %s4
  %s7 = scalar_select 0, %s6, %s4
  // Predicated region
  $region2: #{sbert_forward.16} parent=0 // pred_check
    _
  $region3: #{sbert_forward.16} parent=0 // pred_check_branch
    %9 = sbr.rel (0) target = $region5
  $region4: #{sbert_forward.16} parent=0 // pred_region
    _
  $region5: #{sbert_forward.16} parent=0 // pred_fallthru
    _
  // Predicated region
  $region6: #{sbert_forward.16} parent=0 // pred_check
    _
  $region7: #{sbert_forward.16} parent=0 // pred_check_branch
    %11 = sbr.rel (0) target = $region9
  $region8: #{sbert_forward.16} parent=0 // pred_region
    _
  $region9: #{sbert_forward.16} parent=0 // pred_fallthru
    _
  // Predicated region
  $region10: #{sbert_forward.16} parent=0 // pred_check
    _
  $region11: #{sbert_forward.16} parent=0 // pred_check_branch
    %13 = sbr.rel (0) target = $region13
  $region12: #{sbert_forward.16} parent=0 // pred_region
    _
  $region13: #{sbert_forward.16} parent=0 // pred_fallthru
    _
  %v15 = vld [vmem:[%s0] sm:$0xf]
  %v16 = vld [vmem:[%s0 + $0x4] sm:$0xf]
  %v17 = vld [vmem:[%s1] sm:$0xf]
  %v18 = vld [vmem:[%s1 + $0x4] sm:$0xf]
  %v19 = vld [vmem:[%s1 + $0x8] sm:$0xf]
  %v20 = vld [vmem:[%s1 + $0xc] sm:$0xf]
  %v21 = vld [vmem:[%s2] sm:$0x1]
  %v23 = vlaneseq
  %v24 = vshrl.u32 %v23, 7
  %v25 = vsub.s32 0, %v24
  %v26 = vrot.slane %v21, %v25
  %v30 = vunpack.c.l.b16 %v15
  %v31 = vunpack.c.l.b16 %v16
  %v32 = vpack.c.b16 %v31, %v30
  %v37 = vunpack.c.l.b16 %v17
  %v38 = vunpack.c.l.b16 %v18
  %v39 = vunpack.c.l.b16 %v19
  %v40 = vunpack.c.l.b16 %v20
  %v41 = vpack.c.b16 %v38, %v37
  %v42 = vpack.c.b16 %v40, %v39
  %vm45 = vcmask 261120
  %v47 = vsel %vm45, %v32, 0
  %49 = vmatprep.subr.bf16.mxu0 0
  %50 = vmatpush1.bf16.msra.mxu0 0
  %51 = vmatprep.subr.bf16.mxu0 0
  %52 = vmatpush1.bf16.msra.mxu0 0
  %53 = vmatprep.subr.bf16.mxu0 0
  %54 = vmatpush1.bf16.msra.mxu0 0
  %55 = vmatprep.subr.bf16.mxu0 0
  %56 = vmatpush1.bf16.msra.mxu0 0
  %57 = vmatprep.subr.bf16.mxu0 0
  %58 = vmatpush1.bf16.msra.mxu0 0
  %59 = vmatprep.subr.bf16.mxu0 0
  %60 = vmatpush1.bf16.msra.mxu0 0
  %61 = vmatprep.subr.bf16.mxu0 0
  %62 = vmatpush1.bf16.msra.mxu0 %v42
  %63 = vmatprep.subr.bf16.mxu0 0
  %64 = vmatpush1.bf16.msra.mxu0 %v41
  %65 = vmatprep.subr.bf16.mxu0 0
  %66 = vmatpush2.bf16.msra.mxu0 0
  %67 = vmatprep.subr.bf16.mxu0 0
  %68 = vmatpush2.bf16.msra.mxu0 0
  %69 = vmatprep.subr.bf16.mxu0 0
  %70 = vmatpush2.bf16.msra.mxu0 0
  %71 = vmatprep.subr.bf16.mxu0 0
  %72 = vmatpush2.bf16.msra.mxu0 0
  %73 = vmatprep.subr.bf16.mxu0 0
  %74 = vmatpush2.bf16.msra.mxu0 0
  %75 = vmatprep.subr.bf16.mxu0 0
  %76 = vmatpush2.bf16.msra.mxu0 0
  %77 = vmatprep.subr.bf16.mxu0 0
  %78 = vmatpush2.bf16.msra.mxu0 0
  %79 = vmatprep.subr.bf16.mxu0 0
  %80 = vmatpush2.bf16.msra.mxu0 0
  %81 = vmatprep.mubr.bf16.mxu0 0
  %82 = vmatmul.mubr.bf16.gmra.mxu0 %v47
  %v83 = vpop.f32.mrf.mxu0
  %v84 = vadd.f32 %v26, %v83
  %v85 = vpop.f32.mrf.mxu0
  %v86 = vpop.f32.mrf.mxu0
  %v87 = vadd.f32 %v26, %v86
  %v88 = vpop.f32.mrf.mxu0
  %89 = vdwg.mxu0
  %v90 = vmul.f32 %v84, 0.5
  %v91 = vmul.f32 %v87, 0.5
  %v92 = vmul.f32 %v84, 0.70710677
  %v93 = vmul.f32 %v87, 0.70710677
  %v94 = verf.f32.pop %v92
  %v95 = verf.f32.pop %v93
  %v96 = vadd.f32 %v94, 1.0
  %v97 = vadd.f32 %v95, 1.0
  %v98 = vmul.f32 %v90, %v96
  %v99 = vmul.f32 %v91, %v97
  %v100 = vpack.c.bf16 %v99, %v98
  %v102 = vunpack.c.l.b16 %v100
  %v103 = vunpack.c.h.b16 %v100
  %v104 = vpack.c.b16 %v102, %v102
  %v105 = vpack.c.b16 %v103, %v103
  %vm108 = vcmask 519168
  %109 = vst.msk [vmem:[%s3] sm:$0xf] %vm108, %v104
  %110 = vst.msk [vmem:[%s3 + $0x4] sm:$0xf] %vm108, %v105
  // Predicated region
  $region14: #{sbert_forward.16} parent=0 // pred_check
    _
  $region15: #{sbert_forward.16} parent=0 // pred_check_branch
    %112 = sbr.rel (0) target = $region17
  $region16: #{sbert_forward.16} parent=0 // pred_region
    _
  $region17: #{sbert_forward.16} parent=0 // pred_fallthru
    _
  // Predicated region
  $region18: #{sbert_forward.16} parent=0 // pred_check
    _
  $region19: #{sbert_forward.16} parent=0 // pred_check_branch
    %114 = sbr.rel (0) target = $region21
  $region20: #{sbert_forward.16} parent=0 // pred_region
    _
  $region21: #{sbert_forward.16} parent=0 // pred_fallthru
    _

// kernel: sbert_forward.17
$region0: #{sbert_forward.17}
  #allocation0 [shape = 'u32[]', space=smem, size = 0x4, offset = 0x4, fixed_abs, tag = 'smem constant byte address 0x4 - core index']
  #allocation1 [shape = 'u32[144,128]{1,0:T(1,128)}', space=vmem, size = 0x12000, scoped, tag = 'internal scratch']
  %s0 = inlined_call_operand.vmem [shape: bf16[16,64], index: 0, kind: input, shape index: {}]
  %s1 = inlined_call_operand.vmem [shape: bf16[64,32], index: 1, kind: input, shape index: {}]
  %s2 = inlined_call_operand.vmem [shape: f32[1,32], index: 2, kind: input, shape index: {}]
  %s3 = inlined_call_operand.vmem [shape: bf16[16,32], index: 3, kind: input, shape index: {}]
  %s4 = inlined_call_operand.vmem [shape: f32[1,32], index: 4, kind: input, shape index: {}]
  %s5 = inlined_call_operand.vmem [shape: f32[1,32], index: 5, kind: input, shape index: {}]
  %s6 = inlined_call_operand.vmem [shape: bf16[16,32], index: 6, kind: output, shape index: {}]
  %s7 = sld [smem:[#allocation0]]
  $region34: #{sbert_forward.17} parent=0
    _
  %s9 = ssub.s32 1, %s7
  %s10 = scalar_select 0, %s9, %s7
  // Predicated region
  $region2: #{sbert_forward.17} parent=0 // pred_check
    _
  $region3: #{sbert_forward.17} parent=0 // pred_check_branch
    %12 = sbr.rel (0) target = $region5
  $region4: #{sbert_forward.17} parent=0 // pred_region
    _
  $region5: #{sbert_forward.17} parent=0 // pred_fallthru
    _
  // Predicated region
  $region6: #{sbert_forward.17} parent=0 // pred_check
    _
  $region7: #{sbert_forward.17} parent=0 // pred_check_branch
    %14 = sbr.rel (0) target = $region9
  $region8: #{sbert_forward.17} parent=0 // pred_region
    _
  $region9: #{sbert_forward.17} parent=0 // pred_fallthru
    _
  // Predicated region
  $region10: #{sbert_forward.17} parent=0 // pred_check
    _
  $region11: #{sbert_forward.17} parent=0 // pred_check_branch
    %16 = sbr.rel (0) target = $region13
  $region12: #{sbert_forward.17} parent=0 // pred_region
    _
  $region13: #{sbert_forward.17} parent=0 // pred_fallthru
    _
  // Predicated region
  $region14: #{sbert_forward.17} parent=0 // pred_check
    _
  $region15: #{sbert_forward.17} parent=0 // pred_check_branch
    %18 = sbr.rel (0) target = $region17
  $region16: #{sbert_forward.17} parent=0 // pred_region
    _
  $region17: #{sbert_forward.17} parent=0 // pred_fallthru
    _
  // Predicated region
  $region18: #{sbert_forward.17} parent=0 // pred_check
    _
  $region19: #{sbert_forward.17} parent=0 // pred_check_branch
    %20 = sbr.rel (0) target = $region21
  $region20: #{sbert_forward.17} parent=0 // pred_region
    _
  $region21: #{sbert_forward.17} parent=0 // pred_fallthru
    _
  // Predicated region
  $region22: #{sbert_forward.17} parent=0 // pred_check
    _
  $region23: #{sbert_forward.17} parent=0 // pred_check_branch
    %22 = sbr.rel (0) target = $region25
  $region24: #{sbert_forward.17} parent=0 // pred_region
    _
  $region25: #{sbert_forward.17} parent=0 // pred_fallthru
    _
  %v24 = vld [vmem:[%s0] sm:$0xf]
  %v25 = vld [vmem:[%s0 + $0x4] sm:$0xf]
  %v26 = vld [vmem:[%s1] sm:$0xf]
  %v27 = vld [vmem:[%s1 + $0x4] sm:$0xf]
  %v28 = vld [vmem:[%s1 + $0x8] sm:$0xf]
  %v29 = vld [vmem:[%s1 + $0xc] sm:$0xf]
  %v30 = vld [vmem:[%s1 + $0x10] sm:$0xf]
  %v31 = vld [vmem:[%s1 + $0x14] sm:$0xf]
  %v32 = vld [vmem:[%s1 + $0x18] sm:$0xf]
  %v33 = vld [vmem:[%s1 + $0x1c] sm:$0xf]
  %v34 = vld [vmem:[%s2] sm:$0x1]
  %v36 = vlaneseq
  %v37 = vshrl.u32 %v36, 7
  %v38 = vsub.s32 0, %v37
  %v39 = vrot.slane %v34, %v38
  %v43 = vunpack.c.l.b16 %v24
  %v44 = vunpack.c.l.b16 %v25
  %v45 = vpack.c.b16 %v44, %v43
  %v54 = vunpack.c.l.b16 %v26
  %v55 = vunpack.c.l.b16 %v27
  %v56 = vunpack.c.l.b16 %v28
  %v57 = vunpack.c.l.b16 %v29
  %v58 = vunpack.c.l.b16 %v30
  %v59 = vunpack.c.l.b16 %v31
  %v60 = vunpack.c.l.b16 %v32
  %v61 = vunpack.c.l.b16 %v33
  %v62 = vpack.c.b16 %v55, %v54
  %v63 = vpack.c.b16 %v57, %v56
  %v64 = vpack.c.b16 %v59, %v58
  %v65 = vpack.c.b16 %v61, %v60
  %vm70 = vcmask 523264
  %v72 = vsel %vm70, %v45, 0
  %74 = vmatprep.subr.bf16.mxu0 0
  %75 = vmatpush1.bf16.msra.mxu0 0
  %76 = vmatprep.subr.bf16.mxu0 0
  %77 = vmatpush1.bf16.msra.mxu0 0
  %78 = vmatprep.subr.bf16.mxu0 0
  %79 = vmatpush1.bf16.msra.mxu0 0
  %80 = vmatprep.subr.bf16.mxu0 0
  %81 = vmatpush1.bf16.msra.mxu0 0
  %82 = vmatprep.subr.bf16.mxu0 0
  %83 = vmatpush1.bf16.msra.mxu0 %v65
  %84 = vmatprep.subr.bf16.mxu0 0
  %85 = vmatpush1.bf16.msra.mxu0 %v64
  %86 = vmatprep.subr.bf16.mxu0 0
  %87 = vmatpush1.bf16.msra.mxu0 %v63
  %88 = vmatprep.subr.bf16.mxu0 0
  %89 = vmatpush1.bf16.msra.mxu0 %v62
  %90 = vmatprep.subr.bf16.mxu0 0
  %91 = vmatpush2.bf16.msra.mxu0 0
  %92 = vmatprep.subr.bf16.mxu0 0
  %93 = vmatpush2.bf16.msra.mxu0 0
  %94 = vmatprep.subr.bf16.mxu0 0
  %95 = vmatpush2.bf16.msra.mxu0 0
  %96 = vmatprep.subr.bf16.mxu0 0
  %97 = vmatpush2.bf16.msra.mxu0 0
  %98 = vmatprep.subr.bf16.mxu0 0
  %99 = vmatpush2.bf16.msra.mxu0 0
  %100 = vmatprep.subr.bf16.mxu0 0
  %101 = vmatpush2.bf16.msra.mxu0 0
  %102 = vmatprep.subr.bf16.mxu0 0
  %103 = vmatpush2.bf16.msra.mxu0 0
  %104 = vmatprep.subr.bf16.mxu0 0
  %105 = vmatpush2.bf16.msra.mxu0 0
  %106 = vmatprep.mubr.bf16.mxu0 0
  %107 = vmatmul.mubr.bf16.gmra.mxu0 %v72
  %v108 = vpop.f32.mrf.mxu0
  %v109 = vadd.f32 %v39, %v108
  %v110 = vpop.f32.mrf.mxu0
  %v111 = vpop.f32.mrf.mxu0
  %v112 = vadd.f32 %v39, %v111
  %v113 = vpop.f32.mrf.mxu0
  %114 = vdwg.mxu0
  %v115 = vld [vmem:[%s3] sm:$0xf]
  %v116 = vld [vmem:[%s3 + $0x4] sm:$0xf]
  %v117 = vunpack.c.l.bf16 %v115
  %v118 = vunpack.c.l.bf16 %v116
  %v119 = vadd.f32 %v109, %v117
  %v120 = vadd.f32 %v112, %v118
  %vm121 = vcmask 261120
  %v122 = vsel %vm121, %v119, 0.0
  %123 = vadd.xlane.f32.xlu0 %v122
  %v124 = vpop.xlane.xlu0 %123
  %v125 = vsel %vm121, %v120, 0.0
  %126 = vadd.xlane.f32.xlu0 %v125
  %v127 = vpop.xlane.xlu0 %126
  %v128 = vrcp.pop 32.0
  %v129 = vmul.f32 %v124, %v128
  %v130 = vmul.f32 %v127, %v128
  %v131 = vsub.f32 %v119, %v129
  %v132 = vsub.f32 %v120, %v130
  %v133 = vmul.f32 %v131, %v131
  %v134 = vmul.f32 %v132, %v132
  %v135 = vsel %vm121, %v133, 0.0
  %136 = vadd.xlane.f32.xlu0 %v135
  %v137 = vpop.xlane.xlu0 %136
  %v138 = vsel %vm121, %v134, 0.0
  %139 = vadd.xlane.f32.xlu0 %v138
  %v140 = vpop.xlane.xlu0 %139
  %v141 = vmul.f32 %v137, %v128
  %v142 = vmul.f32 %v140, %v128
  %v143 = vadd.f32 %v141, 1e-12
  %v144 = vadd.f32 %v142, 1e-12
  %v145 = vrsqrt.pop %v143
  %v146 = vrsqrt.pop %v144
  %v147 = vmul.f32 %v131, %v145
  %v148 = vmul.f32 %v132, %v146
  %v149 = vld [vmem:[%s4] sm:$0x1]
  %v151 = vlaneseq
  %v152 = vshrl.u32 %v151, 7
  %v153 = vsub.s32 0, %v152
  %v154 = vrot.slane %v149, %v153
  %v156 = vmul.f32 %v147, %v154
  %v157 = vmul.f32 %v148, %v154
  %v158 = vld [vmem:[%s5] sm:$0x1]
  %v160 = vlaneseq
  %v161 = vshrl.u32 %v160, 7
  %v162 = vsub.s32 0, %v161
  %v163 = vrot.slane %v158, %v162
  %v165 = vadd.f32 %v156, %v163
  %v166 = vadd.f32 %v157, %v163
  %v167 = vpack.c.bf16 %v166, %v165
  %v169 = vunpack.c.l.b16 %v167
  %v170 = vunpack.c.h.b16 %v167
  %v171 = vpack.c.b16 %v169, %v169
  %v172 = vpack.c.b16 %v170, %v170
  %vm175 = vcmask 257024
  %176 = vst.msk [vmem:[%s6] sm:$0xf] %vm175, %v171
  %177 = vst.msk [vmem:[%s6 + $0x4] sm:$0xf] %vm175, %v172
  // Predicated region
  $region26: #{sbert_forward.17} parent=0 // pred_check
    _
  $region27: #{sbert_forward.17} parent=0 // pred_check_branch
    %179 = sbr.rel (0) target = $region29
  $region28: #{sbert_forward.17} parent=0 // pred_region
    _
  $region29: #{sbert_forward.17} parent=0 // pred_fallthru
    _
  // Predicated region
  $region30: #{sbert_forward.17} parent=0 // pred_check
    _
  $region31: #{sbert_forward.17} parent=0 // pred_check_branch
    %181 = sbr.rel (0) target = $region33
  $region32: #{sbert_forward.17} parent=0 // pred_region
    _
  $region33: #{sbert_forward.17} parent=0 // pred_fallthru
    _

</llo_original>
